<compile_context>
chip_gen: v5e
topology: v5e:2x2
jax: 0.10.0
libtpu: 0.0.40
codegen_flags: <defaults>
</compile_context>

<pallas_src>
import functools

import jax
import jax.numpy as jnp
import numpy as np
from jax import lax
from jax.experimental import pallas as pl
from jax.experimental.pallas import tpu as pltpu


# ------------------------------- Pallas kernel --------------------------------
def _decoder_stack_kernel(
    x_ref, pos_ref,
    wqkv_ref, w1_ref, b1_ref, w2_ref, b2_ref,
    wa1_ref, ba1_ref, wa2_ref, ba2_ref,
    out_ref,
    feat_buf, q_buf, k_buf, v_buf, p1_buf,
    *, dim, ti, tj, nj,
):
    l = pl.program_id(1)
    i = pl.program_id(2)
    num_layers = pl.num_programs(1)

    # ---- per-(batch, layer) precompute: qkv projection + pos @ W1 -----------
    @pl.when(i == 0)
    def _():
        # P1 = pos @ W1 once per (b, l): three rank-1 VPU FMAs on (N, H).
        # Per tile, pos-MLP layer 1 becomes relu((P1_i + b1) - P1_j); the
        # (ti, tj, 3) relative-position temporary is never built.
        pos = pos_ref[0]                                    # (N, 3)  f32
        w1 = w1_ref[0]                                      # (3, H)  f32
        p1_buf[...] = (pos[:, 0:1] * w1[0:1, :]
                       + pos[:, 1:2] * w1[1:2, :]
                       + pos[:, 2:3] * w1[2:3, :])

        # Whole-point-set qkv projection: one (N, dim) @ (dim, 3*dim) bf16 MXU
        # matmul with f32 accumulation, split into three lane-aligned buffers.
        def project(feat_bf16):                             # (N, dim) bf16
            qkv = jnp.dot(feat_bf16, wqkv_ref[0],
                          preferred_element_type=jnp.float32)
            q_buf[...] = qkv[:, :dim]
            k_buf[...] = qkv[:, dim:2 * dim]
            v_buf[...] = qkv[:, 2 * dim:]

        @pl.when(l == 0)                 # layer 0 reads the module input
        def _():
            project(x_ref[0].astype(jnp.bfloat16))

        @pl.when(l > 0)                  # later layers read the ping-pong slot
        def _():
            project(feat_buf[(l + 1) & 1])

    ri = pl.multiple_of(i * ti, ti)

    # Hoisted per-i-tile operands (weights already bf16; biases f32).
    q_i = q_buf[pl.ds(ri, ti), :]                           # (ti, dim) f32
    p1_i = p1_buf[pl.ds(ri, ti), :] + b1_ref[0]             # (ti, H)   f32
    w2, b2 = w2_ref[0], b2_ref[0]
    wa1, ba1 = wa1_ref[0], ba1_ref[0]
    wa2, ba2 = wa2_ref[0], ba2_ref[0]
    hid = p1_buf.shape[-1]

    # ---- flash-style online softmax over the key axis (in-kernel j loop) ----
    def j_step(jt, carry):
        m, den, num = carry
        rj = pl.multiple_of(jt * tj, tj)
        k_j = k_buf[pl.ds(rj, tj), :]                       # (tj, dim) f32
        v_j = v_buf[pl.ds(rj, tj), :]                       # (tj, dim) f32
        p1_j = p1_buf[pl.ds(rj, tj), :]                     # (tj, H)   f32

        # Positional embedding: relu((pos_i - pos_j)@W1 + b1) @ W2 + b2
        h = jnp.maximum(p1_i[:, None, :] - p1_j[None, :, :], 0.0)   # (ti,tj,H)
        emb = (jnp.dot(h.reshape(ti * tj, hid).astype(jnp.bfloat16), w2,
                       preferred_element_type=jnp.float32)
               + b2).reshape(ti, tj, dim)

        # Attention-MLP((q_i - k_j) + emb): two bf16 MXU matmuls, f32 accum.
        s_in = (q_i[:, None, :] - k_j[None, :, :] + emb).reshape(ti * tj, dim)
        hs = jnp.maximum(
            jnp.dot(s_in.astype(jnp.bfloat16), wa1,
                    preferred_element_type=jnp.float32) + ba1, 0.0)
        sim = (jnp.dot(hs.astype(jnp.bfloat16), wa2,
                       preferred_element_type=jnp.float32)
               + ba2).reshape(ti, tj, dim)

        v_full = v_j[None, :, :] + emb                      # (ti, tj, dim)

        # Online softmax over j (axis=1), independently per (i, d).
        m_new = jnp.maximum(m, jnp.max(sim, axis=1))
        scale = jnp.exp(m - m_new)
        e = jnp.exp(sim - m_new[:, None, :])
        den = den * scale + jnp.sum(e, axis=1)
        num = num * scale + jnp.sum(e * v_full, axis=1)
        return m_new, den, num

    minus_inf = jnp.full((ti, dim), -jnp.inf, jnp.float32)
    zeros = jnp.zeros((ti, dim), jnp.float32)
    _, den, num = lax.fori_loop(0, nj, j_step, (minus_inf, zeros, zeros))

    result = num * pl.reciprocal(den, approx=True)          # (ti, dim) f32

    @pl.when(l < num_layers - 1)          # feed the next layer (ping-pong slot)
    def _():
        feat_buf[l & 1, pl.ds(ri, ti), :] = result.astype(jnp.bfloat16)

    @pl.when(l == num_layers - 1)         # last layer -> module output
    def _():
        out_ref[0, pl.ds(ri, ti), :] = result.astype(out_ref.dtype)


# --------------------------------- wrapper ------------------------------------
def _vmem_limit_bytes():
    """Generation-aware VMEM budget: ~3/4 of physical, capped at 100 MiB."""
    try:
        cap = int(pltpu.get_tpu_info().vmem_capacity_bytes)
    except Exception:
        cap = 64 * 1024 * 1024            # conservative (v7x-sized) fallback
    return int(min(cap * 3 // 4, 100 * 1024 * 1024))


def transformer_decoder(feature, pos, params, *, tile_i=None, tile_j=None):
    """feature (tgt): (B, N, dim) f32;  pos (memory): (B, L, K, 3) with N = L*K.

    params: dict of arrays stacked along a leading num_layers axis.
    """
    B, N, dim = feature.shape
    pos_flat = pos.reshape(B, -1, 3)
    assert pos_flat.shape[1] == N, "pos must flatten to (B, N, 3)"
    num_layers = params["wqkv"].shape[0]
    pos_hidden = params["w1"].shape[-1]
    attn_hidden = params["wa1"].shape[-1]

    vmem_limit = _vmem_limit_bytes()

    # Pick the largest tile whose per-(i,j)-pair f32 temporaries (h, hs and the
    # emb/sim/e/v_full chain) fit a fraction of the VMEM budget alongside the
    # persistent feature / qkv / pos scratch.
    if tile_i is None or tile_j is None:
        per_pair = 4 * (pos_hidden + attn_hidden + 4 * dim)
        budget = max(vmem_limit // 3, 1)
        t = None
        for cand in (256, 128, 64, 32, 16, 8):
            if N % cand == 0 and cand * cand * per_pair <= budget:
                t = cand
                break
        if t is None:
            t = N if N < 8 else 8
        tile_i = tile_i or min(t, N)
        tile_j = tile_j or min(t, N)

    assert N % tile_i == 0 and N % tile_j == 0
    assert (tile_i % 8 == 0 or tile_i == N) and (tile_j % 8 == 0 or tile_j == N)

    grid = (B, num_layers, N // tile_i)

    # Weights go in as bf16 (MXU operands, no per-tile casts); biases stay f32.
    wqkv = params["wqkv"].astype(jnp.bfloat16)
    w2 = params["w2"].astype(jnp.bfloat16)
    wa1 = params["wa1"].astype(jnp.bfloat16)
    wa2 = params["wa2"].astype(jnp.bfloat16)

    def bspec(shape):   # batch-indexed: whole (N, ...) block resident per b
        return pl.BlockSpec((1,) + tuple(shape[1:]), lambda b, l, i: (b, 0, 0))

    def lspec(shape):   # layer-indexed weights
        return pl.BlockSpec((1,) + tuple(shape[1:]), lambda b, l, i: (l, 0, 0))

    kernel = functools.partial(_decoder_stack_kernel, dim=dim,
                               ti=tile_i, tj=tile_j, nj=N // tile_j)

    return pl.pallas_call(
        kernel,
        out_shape=jax.ShapeDtypeStruct((B, N, dim), feature.dtype),
        grid=grid,
        in_specs=[
            bspec(feature.shape),
            bspec(pos_flat.shape),
            lspec(wqkv.shape),
            lspec(params["w1"].shape), lspec(params["b1"].shape),
            lspec(w2.shape), lspec(params["b2"].shape),
            lspec(wa1.shape), lspec(params["ba1"].shape),
            lspec(wa2.shape), lspec(params["ba2"].shape),
        ],
        out_specs=pl.BlockSpec((1, N, dim), lambda b, l, i: (b, 0, 0)),
        scratch_shapes=[
            pltpu.VMEM((2, N, dim), jnp.bfloat16),      # layer ping-pong feats
            pltpu.VMEM((N, dim), jnp.float32),          # q
            pltpu.VMEM((N, dim), jnp.float32),          # k
            pltpu.VMEM((N, dim), jnp.float32),          # v
            pltpu.VMEM((N, pos_hidden), jnp.float32),   # pos @ W1
        ],
        compiler_params=pltpu.CompilerParams(
            dimension_semantics=("parallel", "arbitrary", "arbitrary"),
            vmem_limit_bytes=vmem_limit),
    )(feature, pos_flat, wqkv, params["w1"], params["b1"],
      w2, params["b2"], wa1, params["ba1"], wa2, params["ba2"])


# --------------------------- deterministic params ------------------------------
def init_params(key, num_layers, dim, pos_hidden=64, attn_mult=4):
    ks = jax.random.split(key, 9)
    s = 0.1

    def mk(k, shape):
        return s * jax.random.normal(k, (num_layers,) + shape, jnp.float32)

    return {
        # stored transposed relative to torch Linear so the kernel does x @ W
        "wqkv": mk(ks[0], (dim, 3 * dim)),
        "w1":   mk(ks[1], (3, pos_hidden)),
        "b1":   mk(ks[2], (1, pos_hidden)),
        "w2":   mk(ks[3], (pos_hidden, dim)),
        "b2":   mk(ks[4], (1, dim)),
        "wa1":  mk(ks[5], (dim, attn_mult * dim)),
        "ba1":  mk(ks[6], (1, attn_mult * dim)),
        "wa2":  mk(ks[7], (attn_mult * dim, dim)),
        "ba2":  mk(ks[8], (1, dim)),
    }


# -------------------------------- pure-JAX ref ---------------------------------
def _mm_bf16(a, b):
    # Mirrors the kernel's MXU precision: bf16 operands, f32 accumulation.
    return jnp.dot(a.astype(jnp.bfloat16), b.astype(jnp.bfloat16),
                   preferred_element_type=jnp.float32)


def _decoder_ref(feature, pos, params):
    B, N, dim = feature.shape
    pos_flat = pos.reshape(B, -1, 3)
    num_layers = params["wqkv"].shape[0]
    x = feature
    for li in range(num_layers):
        wqkv, w1, b1 = params["wqkv"][li], params["w1"][li], params["b1"][li]
        w2, b2 = params["w2"][li], params["b2"][li]
        wa1, ba1 = params["wa1"][li], params["ba1"][li]
        wa2, ba2 = params["wa2"][li], params["ba2"][li]

        qkv = _mm_bf16(x.reshape(B * N, dim), wqkv).reshape(B, N, 3 * dim)
        q, k, v = qkv[..., :dim], qkv[..., dim:2 * dim], qkv[..., 2 * dim:]

        rel = pos_flat[:, :, None, :] - pos_flat[:, None, :, :]      # (B,N,N,3)
        h = jax.nn.relu(jnp.einsum("bijc,ch->bijh", rel, w1) + b1[0])
        emb = (_mm_bf16(h.reshape(B * N * N, -1), w2) + b2[0]).reshape(B, N, N, dim)

        qk_rel = q[:, :, None, :] - k[:, None, :, :]
        hs = jax.nn.relu(_mm_bf16((qk_rel + emb).reshape(B * N * N, dim), wa1) + ba1[0])
        sim = (_mm_bf16(hs, wa2) + ba2[0]).reshape(B, N, N, dim)

        attn = jax.nn.softmax(sim, axis=-2)           # softmax over j
        v_full = v[:, None, :, :] + emb
        x = jnp.sum(attn * v_full, axis=-2)
    return x


# ----------------------------------- main --------------------------------------
if __name__ == "__main__":
    B, L, K, dim = 2, 8, 4, 32          # N = L*K = 32
    num_layers = 2
    N = L * K

    key = jax.random.PRNGKey(0)
    k_feat, k_pos, k_params = jax.random.split(key, 3)

    feature = jax.random.normal(k_feat, (B, N, dim), jnp.float32)    # tgt
    pos = jax.random.normal(k_pos, (B, L, K, 3), jnp.float32)        # memory
    params = init_params(k_params, num_layers, dim)

    # tile_i / tile_j chosen < N so the in-kernel j loop, the i tiling and the
    # layer ping-pong are all exercised (grid = (2, 2, 2), j loop of 2 steps).
    out = transformer_decoder(feature, pos, params, tile_i=16, tile_j=16)
    out = jax.block_until_ready(out)

    ref = jax.block_until_ready(_decoder_ref(feature, pos, params))
    # Tolerance accounts for bf16 MXU operands (mirrored in the reference) and
    # the EUP approximate reciprocal used for the fused softmax normalization.
    np.testing.assert_allclose(np.asarray(out), np.asarray(ref),
                               rtol=1e-2, atol=1e-2)

    print("KERNEL_OK")
</pallas_src>

<mosaic_0001>
module attributes {stable_mosaic.version = 11 : i64} {
  func.func @_decoder_stack_kernel(%arg0: i32, %arg1: i32, %arg2: i32, %arg3: memref<1x32x32xf32, #tpu.memory_space<vmem>>, %arg4: memref<1x32x3xf32, #tpu.memory_space<vmem>>, %arg5: memref<1x32x96xbf16, #tpu.memory_space<vmem>>, %arg6: memref<1x3x64xf32, #tpu.memory_space<vmem>>, %arg7: memref<1x1x64xf32, #tpu.memory_space<vmem>>, %arg8: memref<1x64x32xbf16, #tpu.memory_space<vmem>>, %arg9: memref<1x1x32xf32, #tpu.memory_space<vmem>>, %arg10: memref<1x32x128xbf16, #tpu.memory_space<vmem>>, %arg11: memref<1x1x128xf32, #tpu.memory_space<vmem>>, %arg12: memref<1x128x32xbf16, #tpu.memory_space<vmem>>, %arg13: memref<1x1x32xf32, #tpu.memory_space<vmem>>, %arg14: memref<1x32x32xf32, #tpu.memory_space<vmem>>, %arg15: memref<2x32x32xbf16, #tpu.memory_space<vmem>>, %arg16: memref<32x32xf32, #tpu.memory_space<vmem>>, %arg17: memref<32x32xf32, #tpu.memory_space<vmem>>, %arg18: memref<32x32xf32, #tpu.memory_space<vmem>>, %arg19: memref<32x64xf32, #tpu.memory_space<vmem>>) attributes {dimension_semantics = [#tpu.dimension_semantics<parallel>, #tpu.dimension_semantics<arbitrary>, #tpu.dimension_semantics<arbitrary>], iteration_bounds = array<i64: 2, 2, 2>, scalar_prefetch = 0 : i64, scratch_operands = 5 : i64, tpu.core_type = #tpu.core_type<tc>, window_params = [{transform_indices = @transform_0, window_bounds = array<i64: 1, 32, 32>}, {transform_indices = @transform_1, window_bounds = array<i64: 1, 32, 3>}, {transform_indices = @transform_2, window_bounds = array<i64: 1, 32, 96>}, {transform_indices = @transform_3, window_bounds = array<i64: 1, 3, 64>}, {transform_indices = @transform_4, window_bounds = array<i64: 1, 1, 64>}, {transform_indices = @transform_5, window_bounds = array<i64: 1, 64, 32>}, {transform_indices = @transform_6, window_bounds = array<i64: 1, 1, 32>}, {transform_indices = @transform_7, window_bounds = array<i64: 1, 32, 128>}, {transform_indices = @transform_8, window_bounds = array<i64: 1, 1, 128>}, {transform_indices = @transform_9, window_bounds = array<i64: 1, 128, 32>}, {transform_indices = @transform_10, window_bounds = array<i64: 1, 1, 32>}, {transform_indices = @transform_11, window_bounds = array<i64: 1, 32, 32>}]} {
    %c0_i32 = arith.constant 0 : i32
    %0 = arith.cmpi eq, %arg2, %c0_i32 : i32
    %1 = arith.extui %0 : i1 to i32
    %c0_i32_0 = arith.constant 0 : i32
    %2 = arith.cmpi ne, %1, %c0_i32_0 : i32
    scf.if %2 {
      %c0_30 = arith.constant 0 : index
      %c0_31 = arith.constant 0 : index
      %c0_32 = arith.constant 0 : index
      %37 = vector.load %arg4[%c0_30, %c0_31, %c0_32] : memref<1x32x3xf32, #tpu.memory_space<vmem>>, vector<1x32x3xf32>
      %38 = vector.shape_cast %37 : vector<1x32x3xf32> to vector<32x3xf32>
      %c0_33 = arith.constant 0 : index
      %c0_34 = arith.constant 0 : index
      %c0_35 = arith.constant 0 : index
      %39 = vector.load %arg6[%c0_33, %c0_34, %c0_35] : memref<1x3x64xf32, #tpu.memory_space<vmem>>, vector<1x3x64xf32>
      %40 = vector.shape_cast %39 : vector<1x3x64xf32> to vector<3x64xf32>
      %41 = vector.extract_strided_slice %38 {offsets = [0, 0], sizes = [32, 1], strides = [1, 1]} : vector<32x3xf32> to vector<32x1xf32>
      %42 = vector.extract_strided_slice %40 {offsets = [0, 0], sizes = [1, 64], strides = [1, 1]} : vector<3x64xf32> to vector<1x64xf32>
      %43 = vector.broadcast %41 : vector<32x1xf32> to vector<32x64xf32>
      %44 = vector.broadcast %42 : vector<1x64xf32> to vector<32x64xf32>
      %45 = arith.mulf %43, %44 : vector<32x64xf32>
      %46 = vector.extract_strided_slice %38 {offsets = [0, 1], sizes = [32, 1], strides = [1, 1]} : vector<32x3xf32> to vector<32x1xf32>
      %47 = vector.extract_strided_slice %40 {offsets = [1, 0], sizes = [1, 64], strides = [1, 1]} : vector<3x64xf32> to vector<1x64xf32>
      %48 = vector.broadcast %46 : vector<32x1xf32> to vector<32x64xf32>
      %49 = vector.broadcast %47 : vector<1x64xf32> to vector<32x64xf32>
      %50 = arith.mulf %48, %49 : vector<32x64xf32>
      %51 = arith.addf %45, %50 : vector<32x64xf32>
      %52 = vector.extract_strided_slice %38 {offsets = [0, 2], sizes = [32, 1], strides = [1, 1]} : vector<32x3xf32> to vector<32x1xf32>
      %53 = vector.extract_strided_slice %40 {offsets = [2, 0], sizes = [1, 64], strides = [1, 1]} : vector<3x64xf32> to vector<1x64xf32>
      %54 = vector.broadcast %52 : vector<32x1xf32> to vector<32x64xf32>
      %55 = vector.broadcast %53 : vector<1x64xf32> to vector<32x64xf32>
      %56 = arith.mulf %54, %55 : vector<32x64xf32>
      %57 = arith.addf %51, %56 : vector<32x64xf32>
      %c0_36 = arith.constant 0 : index
      %c0_37 = arith.constant 0 : index
      %58 = vector.load %arg19[%c0_36, %c0_37] : memref<32x64xf32, #tpu.memory_space<vmem>>, vector<32x64xf32>
      tpu.vector_store %arg19[%c0_36, %c0_37], %57 {strides = array<i32>} : memref<32x64xf32, #tpu.memory_space<vmem>>, vector<32x64xf32>,
      %c0_i32_38 = arith.constant 0 : i32
      %59 = arith.cmpi eq, %arg1, %c0_i32_38 : i32
      %60 = arith.extui %59 : i1 to i32
      %c0_i32_39 = arith.constant 0 : i32
      %61 = arith.cmpi ne, %60, %c0_i32_39 : i32
      scf.if %61 {
        %c0_42 = arith.constant 0 : index
        %c0_43 = arith.constant 0 : index
        %c0_44 = arith.constant 0 : index
        %65 = vector.load %arg3[%c0_42, %c0_43, %c0_44] : memref<1x32x32xf32, #tpu.memory_space<vmem>>, vector<1x32x32xf32>
        %66 = vector.shape_cast %65 : vector<1x32x32xf32> to vector<32x32xf32>
        %67 = arith.truncf %66 : vector<32x32xf32> to vector<32x32xbf16>
        %c0_45 = arith.constant 0 : index
        %c0_46 = arith.constant 0 : index
        %c0_47 = arith.constant 0 : index
        %68 = vector.load %arg5[%c0_45, %c0_46, %c0_47] : memref<1x32x96xbf16, #tpu.memory_space<vmem>>, vector<1x32x96xbf16>
        %69 = vector.shape_cast %68 : vector<1x32x96xbf16> to vector<32x96xbf16>
        %cst_48 = arith.constant dense<0.000000e+00> : vector<32x96xf32>
        %70 = tpu.matmul %67, %69, %cst_48 {dimension_numbers = #tpu.dot_dimension_numbers<[1], [0], [0], [1], [0, 0, 1, 1], [], []>} : vector<32x32xbf16>, vector<32x96xbf16>, vector<32x96xf32> -> vector<32x96xf32>
        %71 = vector.extract_strided_slice %70 {offsets = [0, 0], sizes = [32, 32], strides = [1, 1]} : vector<32x96xf32> to vector<32x32xf32>
        %c0_49 = arith.constant 0 : index
        %c0_50 = arith.constant 0 : index
        %72 = vector.load %arg16[%c0_49, %c0_50] : memref<32x32xf32, #tpu.memory_space<vmem>>, vector<32x32xf32>
        tpu.vector_store %arg16[%c0_49, %c0_50], %71 {strides = array<i32>} : memref<32x32xf32, #tpu.memory_space<vmem>>, vector<32x32xf32>,
        %73 = vector.extract_strided_slice %70 {offsets = [0, 32], sizes = [32, 32], strides = [1, 1]} : vector<32x96xf32> to vector<32x32xf32>
        %c0_51 = arith.constant 0 : index
        %c0_52 = arith.constant 0 : index
        %74 = vector.load %arg17[%c0_51, %c0_52] : memref<32x32xf32, #tpu.memory_space<vmem>>, vector<32x32xf32>
        tpu.vector_store %arg17[%c0_51, %c0_52], %73 {strides = array<i32>} : memref<32x32xf32, #tpu.memory_space<vmem>>, vector<32x32xf32>,
        %75 = vector.extract_strided_slice %70 {offsets = [0, 64], sizes = [32, 32], strides = [1, 1]} : vector<32x96xf32> to vector<32x32xf32>
        %c0_53 = arith.constant 0 : index
        %c0_54 = arith.constant 0 : index
        %76 = vector.load %arg18[%c0_53, %c0_54] : memref<32x32xf32, #tpu.memory_space<vmem>>, vector<32x32xf32>
        tpu.vector_store %arg18[%c0_53, %c0_54], %75 {strides = array<i32>} : memref<32x32xf32, #tpu.memory_space<vmem>>, vector<32x32xf32>,
      } else {
      }
      %c0_i32_40 = arith.constant 0 : i32
      %62 = arith.cmpi sgt, %arg1, %c0_i32_40 : i32
      %63 = arith.extui %62 : i1 to i32
      %c0_i32_41 = arith.constant 0 : i32
      %64 = arith.cmpi ne, %63, %c0_i32_41 : i32
      scf.if %64 {
        %c1_i32_42 = arith.constant 1 : i32
        %65 = arith.addi %arg1, %c1_i32_42 : i32
        %c1_i32_43 = arith.constant 1 : i32
        %66 = arith.andi %65, %c1_i32_43 : i32
        %67 = arith.index_cast %66 : i32 to index
        %c0_44 = arith.constant 0 : index
        %c0_45 = arith.constant 0 : index
        %68 = vector.load %arg15[%67, %c0_44, %c0_45] : memref<2x32x32xbf16, #tpu.memory_space<vmem>>, vector<1x32x32xbf16>
        %69 = vector.shape_cast %68 : vector<1x32x32xbf16> to vector<32x32xbf16>
        %c0_46 = arith.constant 0 : index
        %c0_47 = arith.constant 0 : index
        %c0_48 = arith.constant 0 : index
        %70 = vector.load %arg5[%c0_46, %c0_47, %c0_48] : memref<1x32x96xbf16, #tpu.memory_space<vmem>>, vector<1x32x96xbf16>
        %71 = vector.shape_cast %70 : vector<1x32x96xbf16> to vector<32x96xbf16>
        %cst_49 = arith.constant dense<0.000000e+00> : vector<32x96xf32>
        %72 = tpu.matmul %69, %71, %cst_49 {dimension_numbers = #tpu.dot_dimension_numbers<[1], [0], [0], [1], [0, 0, 1, 1], [], []>} : vector<32x32xbf16>, vector<32x96xbf16>, vector<32x96xf32> -> vector<32x96xf32>
        %73 = vector.extract_strided_slice %72 {offsets = [0, 0], sizes = [32, 32], strides = [1, 1]} : vector<32x96xf32> to vector<32x32xf32>
        %c0_50 = arith.constant 0 : index
        %c0_51 = arith.constant 0 : index
        %74 = vector.load %arg16[%c0_50, %c0_51] : memref<32x32xf32, #tpu.memory_space<vmem>>, vector<32x32xf32>
        tpu.vector_store %arg16[%c0_50, %c0_51], %73 {strides = array<i32>} : memref<32x32xf32, #tpu.memory_space<vmem>>, vector<32x32xf32>,
        %75 = vector.extract_strided_slice %72 {offsets = [0, 32], sizes = [32, 32], strides = [1, 1]} : vector<32x96xf32> to vector<32x32xf32>
        %c0_52 = arith.constant 0 : index
        %c0_53 = arith.constant 0 : index
        %76 = vector.load %arg17[%c0_52, %c0_53] : memref<32x32xf32, #tpu.memory_space<vmem>>, vector<32x32xf32>
        tpu.vector_store %arg17[%c0_52, %c0_53], %75 {strides = array<i32>} : memref<32x32xf32, #tpu.memory_space<vmem>>, vector<32x32xf32>,
        %77 = vector.extract_strided_slice %72 {offsets = [0, 64], sizes = [32, 32], strides = [1, 1]} : vector<32x96xf32> to vector<32x32xf32>
        %c0_54 = arith.constant 0 : index
        %c0_55 = arith.constant 0 : index
        %78 = vector.load %arg18[%c0_54, %c0_55] : memref<32x32xf32, #tpu.memory_space<vmem>>, vector<32x32xf32>
        tpu.vector_store %arg18[%c0_54, %c0_55], %77 {strides = array<i32>} : memref<32x32xf32, #tpu.memory_space<vmem>>, vector<32x32xf32>,
      } else {
      }
    } else {
    }
    %c16_i32 = arith.constant 16 : i32
    %3 = arith.muli %arg2, %c16_i32 : i32
    %4 = tpu.assume_multiple %3, 16 : i32
    %5 = arith.index_cast %4 : i32 to index
    %c0 = arith.constant 0 : index
    %6 = vector.load %arg16[%5, %c0] : memref<32x32xf32, #tpu.memory_space<vmem>>, vector<16x32xf32>
    %7 = arith.index_cast %4 : i32 to index
    %c0_1 = arith.constant 0 : index
    %8 = vector.load %arg19[%7, %c0_1] : memref<32x64xf32, #tpu.memory_space<vmem>>, vector<16x64xf32>
    %c0_2 = arith.constant 0 : index
    %c0_3 = arith.constant 0 : index
    %c0_4 = arith.constant 0 : index
    %9 = vector.load %arg7[%c0_2, %c0_3, %c0_4] : memref<1x1x64xf32, #tpu.memory_space<vmem>>, vector<1x1x64xf32>
    %10 = vector.shape_cast %9 : vector<1x1x64xf32> to vector<1x64xf32>
    %11 = vector.broadcast %10 : vector<1x64xf32> to vector<16x64xf32>
    %12 = arith.addf %8, %11 : vector<16x64xf32>
    %c0_5 = arith.constant 0 : index
    %c0_6 = arith.constant 0 : index
    %c0_7 = arith.constant 0 : index
    %13 = vector.load %arg8[%c0_5, %c0_6, %c0_7] : memref<1x64x32xbf16, #tpu.memory_space<vmem>>, vector<1x64x32xbf16>
    %14 = vector.shape_cast %13 : vector<1x64x32xbf16> to vector<64x32xbf16>
    %c0_8 = arith.constant 0 : index
    %c0_9 = arith.constant 0 : index
    %c0_10 = arith.constant 0 : index
    %15 = vector.load %arg9[%c0_8, %c0_9, %c0_10] : memref<1x1x32xf32, #tpu.memory_space<vmem>>, vector<1x1x32xf32>
    %16 = vector.shape_cast %15 : vector<1x1x32xf32> to vector<1x32xf32>
    %c0_11 = arith.constant 0 : index
    %c0_12 = arith.constant 0 : index
    %c0_13 = arith.constant 0 : index
    %17 = vector.load %arg10[%c0_11, %c0_12, %c0_13] : memref<1x32x128xbf16, #tpu.memory_space<vmem>>, vector<1x32x128xbf16>
    %18 = vector.shape_cast %17 : vector<1x32x128xbf16> to vector<32x128xbf16>
    %c0_14 = arith.constant 0 : index
    %c0_15 = arith.constant 0 : index
    %c0_16 = arith.constant 0 : index
    %19 = vector.load %arg11[%c0_14, %c0_15, %c0_16] : memref<1x1x128xf32, #tpu.memory_space<vmem>>, vector<1x1x128xf32>
    %20 = vector.shape_cast %19 : vector<1x1x128xf32> to vector<1x128xf32>
    %c0_17 = arith.constant 0 : index
    %c0_18 = arith.constant 0 : index
    %c0_19 = arith.constant 0 : index
    %21 = vector.load %arg12[%c0_17, %c0_18, %c0_19] : memref<1x128x32xbf16, #tpu.memory_space<vmem>>, vector<1x128x32xbf16>
    %22 = vector.shape_cast %21 : vector<1x128x32xbf16> to vector<128x32xbf16>
    %c0_20 = arith.constant 0 : index
    %c0_21 = arith.constant 0 : index
    %c0_22 = arith.constant 0 : index
    %23 = vector.load %arg13[%c0_20, %c0_21, %c0_22] : memref<1x1x32xf32, #tpu.memory_space<vmem>>, vector<1x1x32xf32>
    %24 = vector.shape_cast %23 : vector<1x1x32xf32> to vector<1x32xf32>
    %cst = arith.constant 0xFF800000 : f32
    %25 = vector.broadcast %cst : f32 to vector<16x32xf32>
    %cst_23 = arith.constant 0.000000e+00 : f32
    %26 = vector.broadcast %cst_23 : f32 to vector<16x32xf32>
    %c0_i32_24 = arith.constant 0 : i32
    %c2_i32 = arith.constant 2 : i32
    %27 = arith.addi %c0_i32_24, %c2_i32 : i32
    %c1_i32 = arith.constant 1 : i32
    %28:3 = scf.for %arg20 = %c0_i32_24 to %27 step %c1_i32 iter_args(%arg21 = %25, %arg22 = %26, %arg23 = %26) -> (vector<16x32xf32>, vector<16x32xf32>, vector<16x32xf32>)  : i32 {
      %c16_i32_30 = arith.constant 16 : i32
      %37 = arith.muli %arg20, %c16_i32_30 : i32
      %38 = tpu.assume_multiple %37, 16 : i32
      %39 = arith.index_cast %38 : i32 to index
      %c0_31 = arith.constant 0 : index
      %40 = vector.load %arg17[%39, %c0_31] : memref<32x32xf32, #tpu.memory_space<vmem>>, vector<16x32xf32>
      %41 = arith.index_cast %38 : i32 to index
      %c0_32 = arith.constant 0 : index
      %42 = vector.load %arg18[%41, %c0_32] : memref<32x32xf32, #tpu.memory_space<vmem>>, vector<16x32xf32>
      %43 = arith.index_cast %38 : i32 to index
      %c0_33 = arith.constant 0 : index
      %44 = vector.load %arg19[%43, %c0_33] : memref<32x64xf32, #tpu.memory_space<vmem>>, vector<16x64xf32>
      %45 = vector.shape_cast %12 : vector<16x64xf32> to vector<16x1x64xf32>
      %46 = vector.shape_cast %44 : vector<16x64xf32> to vector<1x16x64xf32>
      %47 = vector.broadcast %45 : vector<16x1x64xf32> to vector<16x16x64xf32>
      %48 = vector.broadcast %46 : vector<1x16x64xf32> to vector<16x16x64xf32>
      %49 = arith.subf %47, %48 : vector<16x16x64xf32>
      %cst_34 = arith.constant 0.000000e+00 : f32
      %50 = vector.broadcast %cst_34 : f32 to vector<16x16x64xf32>
      %51 = arith.maximumf %49, %50 : vector<16x16x64xf32>
      %52 = vector.shape_cast %51 : vector<16x16x64xf32> to vector<256x64xf32>
      %53 = arith.truncf %52 : vector<256x64xf32> to vector<256x64xbf16>
      %cst_35 = arith.constant dense<0.000000e+00> : vector<256x32xf32>
      %54 = tpu.matmul %53, %14, %cst_35 {dimension_numbers = #tpu.dot_dimension_numbers<[1], [0], [0], [1], [0, 0, 1, 1], [], []>} : vector<256x64xbf16>, vector<64x32xbf16>, vector<256x32xf32> -> vector<256x32xf32>
      %55 = vector.broadcast %16 : vector<1x32xf32> to vector<256x32xf32>
      %56 = arith.addf %54, %55 : vector<256x32xf32>
      %57 = vector.shape_cast %56 : vector<256x32xf32> to vector<16x16x32xf32>
      %58 = vector.shape_cast %6 : vector<16x32xf32> to vector<16x1x32xf32>
      %59 = vector.shape_cast %40 : vector<16x32xf32> to vector<1x16x32xf32>
      %60 = vector.broadcast %58 : vector<16x1x32xf32> to vector<16x16x32xf32>
      %61 = vector.broadcast %59 : vector<1x16x32xf32> to vector<16x16x32xf32>
      %62 = arith.subf %60, %61 : vector<16x16x32xf32>
      %63 = arith.addf %62, %57 : vector<16x16x32xf32>
      %64 = vector.shape_cast %63 : vector<16x16x32xf32> to vector<256x32xf32>
      %65 = arith.truncf %64 : vector<256x32xf32> to vector<256x32xbf16>
      %cst_36 = arith.constant dense<0.000000e+00> : vector<256x128xf32>
      %66 = tpu.matmul %65, %18, %cst_36 {dimension_numbers = #tpu.dot_dimension_numbers<[1], [0], [0], [1], [0, 0, 1, 1], [], []>} : vector<256x32xbf16>, vector<32x128xbf16>, vector<256x128xf32> -> vector<256x128xf32>
      %67 = vector.broadcast %20 : vector<1x128xf32> to vector<256x128xf32>
      %68 = arith.addf %66, %67 : vector<256x128xf32>
      %cst_37 = arith.constant 0.000000e+00 : f32
      %69 = vector.broadcast %cst_37 : f32 to vector<256x128xf32>
      %70 = arith.maximumf %68, %69 : vector<256x128xf32>
      %71 = arith.truncf %70 : vector<256x128xf32> to vector<256x128xbf16>
      %cst_38 = arith.constant dense<0.000000e+00> : vector<256x32xf32>
      %72 = tpu.matmul %71, %22, %cst_38 {dimension_numbers = #tpu.dot_dimension_numbers<[1], [0], [0], [1], [0, 0, 1, 1], [], []>} : vector<256x128xbf16>, vector<128x32xbf16>, vector<256x32xf32> -> vector<256x32xf32>
      %73 = vector.broadcast %24 : vector<1x32xf32> to vector<256x32xf32>
      %74 = arith.addf %72, %73 : vector<256x32xf32>
      %75 = vector.shape_cast %74 : vector<256x32xf32> to vector<16x16x32xf32>
      %76 = vector.shape_cast %42 : vector<16x32xf32> to vector<1x16x32xf32>
      %77 = vector.broadcast %76 : vector<1x16x32xf32> to vector<16x16x32xf32>
      %78 = arith.addf %77, %57 : vector<16x16x32xf32>
      %cst_39 = arith.constant dense<0xFF800000> : vector<16x32xf32>
      %79 = vector.multi_reduction <maximumf>, %75, %cst_39 [1] : vector<16x16x32xf32> to vector<16x32xf32>
      %80 = arith.maximumf %arg21, %79 : vector<16x32xf32>
      %81 = arith.subf %arg21, %80 : vector<16x32xf32>
      %82 = math.exp %81 : vector<16x32xf32>
      %83 = vector.shape_cast %80 : vector<16x32xf32> to vector<16x1x32xf32>
      %84 = vector.broadcast %83 : vector<16x1x32xf32> to vector<16x16x32xf32>
      %85 = arith.subf %75, %84 : vector<16x16x32xf32>
      %86 = math.exp %85 : vector<16x16x32xf32>
      %87 = arith.mulf %arg22, %82 : vector<16x32xf32>
      %cst_40 = arith.constant dense<0.000000e+00> : vector<16x32xf32>
      %88 = vector.multi_reduction <add>, %86, %cst_40 [1] : vector<16x16x32xf32> to vector<16x32xf32>
      %89 = arith.addf %87, %88 : vector<16x32xf32>
      %90 = arith.mulf %arg23, %82 : vector<16x32xf32>
      %91 = arith.mulf %86, %78 : vector<16x16x32xf32>
      %cst_41 = arith.constant dense<0.000000e+00> : vector<16x32xf32>
      %92 = vector.multi_reduction <add>, %91, %cst_41 [1] : vector<16x16x32xf32> to vector<16x32xf32>
      %93 = arith.addf %90, %92 : vector<16x32xf32>
      scf.yield %80, %89, %93 : vector<16x32xf32>, vector<16x32xf32>, vector<16x32xf32>
    }
    %c2_i32_25 = arith.constant 2 : i32
    %29 = tpu.reciprocal %28#1 {approx = true} : vector<16x32xf32> -> vector<16x32xf32>
    %30 = arith.mulf %28#2, %29 : vector<16x32xf32>
    %c1_i32_26 = arith.constant 1 : i32
    %31 = arith.cmpi slt, %arg1, %c1_i32_26 : i32
    %32 = arith.extui %31 : i1 to i32
    %c0_i32_27 = arith.constant 0 : i32
    %33 = arith.cmpi ne, %32, %c0_i32_27 : i32
    scf.if %33 {
      %37 = arith.truncf %30 : vector<16x32xf32> to vector<16x32xbf16>
      %c1_i32_30 = arith.constant 1 : i32
      %38 = arith.andi %arg1, %c1_i32_30 : i32
      %39 = arith.index_cast %38 : i32 to index
      %40 = arith.index_cast %4 : i32 to index
      %c0_31 = arith.constant 0 : index
      %41 = vector.load %arg15[%39, %40, %c0_31] : memref<2x32x32xbf16, #tpu.memory_space<vmem>>, vector<1x16x32xbf16>
      %42 = vector.shape_cast %41 : vector<1x16x32xbf16> to vector<16x32xbf16>
      %43 = vector.shape_cast %37 : vector<16x32xbf16> to vector<1x16x32xbf16>
      tpu.vector_store %arg15[%39, %40, %c0_31], %43 {strides = array<i32>} : memref<2x32x32xbf16, #tpu.memory_space<vmem>>, vector<1x16x32xbf16>,
    } else {
    }
    %c1_i32_28 = arith.constant 1 : i32
    %34 = arith.cmpi eq, %arg1, %c1_i32_28 : i32
    %35 = arith.extui %34 : i1 to i32
    %c0_i32_29 = arith.constant 0 : i32
    %36 = arith.cmpi ne, %35, %c0_i32_29 : i32
    scf.if %36 {
      %c0_30 = arith.constant 0 : index
      %37 = arith.index_cast %4 : i32 to index
      %c0_31 = arith.constant 0 : index
      %38 = vector.load %arg14[%c0_30, %37, %c0_31] : memref<1x32x32xf32, #tpu.memory_space<vmem>>, vector<1x16x32xf32>
      %39 = vector.shape_cast %38 : vector<1x16x32xf32> to vector<16x32xf32>
      %40 = vector.shape_cast %30 : vector<16x32xf32> to vector<1x16x32xf32>
      tpu.vector_store %arg14[%c0_30, %37, %c0_31], %40 {strides = array<i32>} : memref<1x32x32xf32, #tpu.memory_space<vmem>>, vector<1x16x32xf32>,
    } else {
    }
    return
  }
  func.func @transform_0(%arg0: i32, %arg1: i32, %arg2: i32) -> (i32, i32, i32) {
    %c0_i32 = arith.constant 0 : i32
    %c0_i32_0 = arith.constant 0 : i32
    %c0_i32_1 = arith.constant 0 : i32
    return %arg0, %c0_i32, %c0_i32_0 : i32, i32, i32
  }
  func.func @transform_1(%arg0: i32, %arg1: i32, %arg2: i32) -> (i32, i32, i32) {
    %c0_i32 = arith.constant 0 : i32
    %c0_i32_0 = arith.constant 0 : i32
    %c0_i32_1 = arith.constant 0 : i32
    return %arg0, %c0_i32, %c0_i32_0 : i32, i32, i32
  }
  func.func @transform_2(%arg0: i32, %arg1: i32, %arg2: i32) -> (i32, i32, i32) {
    %c0_i32 = arith.constant 0 : i32
    %c0_i32_0 = arith.constant 0 : i32
    %c0_i32_1 = arith.constant 0 : i32
    return %arg1, %c0_i32, %c0_i32_0 : i32, i32, i32
  }
  func.func @transform_3(%arg0: i32, %arg1: i32, %arg2: i32) -> (i32, i32, i32) {
    %c0_i32 = arith.constant 0 : i32
    %c0_i32_0 = arith.constant 0 : i32
    %c0_i32_1 = arith.constant 0 : i32
    return %arg1, %c0_i32, %c0_i32_0 : i32, i32, i32
  }
  func.func @transform_4(%arg0: i32, %arg1: i32, %arg2: i32) -> (i32, i32, i32) {
    %c0_i32 = arith.constant 0 : i32
    %c0_i32_0 = arith.constant 0 : i32
    %c0_i32_1 = arith.constant 0 : i32
    return %arg1, %c0_i32, %c0_i32_0 : i32, i32, i32
  }
  func.func @transform_5(%arg0: i32, %arg1: i32, %arg2: i32) -> (i32, i32, i32) {
    %c0_i32 = arith.constant 0 : i32
    %c0_i32_0 = arith.constant 0 : i32
    %c0_i32_1 = arith.constant 0 : i32
    return %arg1, %c0_i32, %c0_i32_0 : i32, i32, i32
  }
  func.func @transform_6(%arg0: i32, %arg1: i32, %arg2: i32) -> (i32, i32, i32) {
    %c0_i32 = arith.constant 0 : i32
    %c0_i32_0 = arith.constant 0 : i32
    %c0_i32_1 = arith.constant 0 : i32
    return %arg1, %c0_i32, %c0_i32_0 : i32, i32, i32
  }
  func.func @transform_7(%arg0: i32, %arg1: i32, %arg2: i32) -> (i32, i32, i32) {
    %c0_i32 = arith.constant 0 : i32
    %c0_i32_0 = arith.constant 0 : i32
    %c0_i32_1 = arith.constant 0 : i32
    return %arg1, %c0_i32, %c0_i32_0 : i32, i32, i32
  }
  func.func @transform_8(%arg0: i32, %arg1: i32, %arg2: i32) -> (i32, i32, i32) {
    %c0_i32 = arith.constant 0 : i32
    %c0_i32_0 = arith.constant 0 : i32
    %c0_i32_1 = arith.constant 0 : i32
    return %arg1, %c0_i32, %c0_i32_0 : i32, i32, i32
  }
  func.func @transform_9(%arg0: i32, %arg1: i32, %arg2: i32) -> (i32, i32, i32) {
    %c0_i32 = arith.constant 0 : i32
    %c0_i32_0 = arith.constant 0 : i32
    %c0_i32_1 = arith.constant 0 : i32
    return %arg1, %c0_i32, %c0_i32_0 : i32, i32, i32
  }
  func.func @transform_10(%arg0: i32, %arg1: i32, %arg2: i32) -> (i32, i32, i32) {
    %c0_i32 = arith.constant 0 : i32
    %c0_i32_0 = arith.constant 0 : i32
    %c0_i32_1 = arith.constant 0 : i32
    return %arg1, %c0_i32, %c0_i32_0 : i32, i32, i32
  }
  func.func @transform_11(%arg0: i32, %arg1: i32, %arg2: i32) -> (i32, i32, i32) {
    %c0_i32 = arith.constant 0 : i32
    %c0_i32_0 = arith.constant 0 : i32
    %c0_i32_1 = arith.constant 0 : i32
    return %arg0, %c0_i32, %c0_i32_0 : i32, i32, i32
  }
}

</mosaic_0001>

<llo_original>
// kernel: tpu_custom_call.1
$region0: #{tpu_custom_call.1}
  #allocation0 [shape = 'u32[]', space=smem, size = 0x4, offset = 0x4, fixed_abs, tag = 'smem constant byte address 0x4 - core index']
  #allocation1 [shape = 'u32[72,128]{1,0:T(1,128)}', space=vmem, size = 0x9000, scoped, tag = 'internal scratch']
  #allocation2 [shape = 'bf16[2,32,32]{2,1,0:T(8,128)(2,1)}', space=vmem, size = 0x4000, scoped, tag = 'scratch operand']
  #allocation3 [shape = 'f32[32,32]{1,0:T(8,128)}', space=vmem, size = 0x4000, scoped, tag = 'scratch operand']
  #allocation4 [shape = 'f32[32,32]{1,0:T(8,128)}', space=vmem, size = 0x4000, scoped, tag = 'scratch operand']
  #allocation5 [shape = 'f32[32,32]{1,0:T(8,128)}', space=vmem, size = 0x4000, scoped, tag = 'scratch operand']
  #allocation6 [shape = 'f32[32,64]{1,0:T(8,128)}', space=vmem, size = 0x4000, scoped, tag = 'scratch operand']
  %s0 = inlined_call_operand.vmem [shape: f32[2,32,32], index: 0, kind: input, shape index: {}]
  %s1 = inlined_call_operand.vmem [shape: f32[2,32,3], index: 1, kind: input, shape index: {}]
  %s2 = inlined_call_operand.vmem [shape: bf16[2,32,96], index: 2, kind: input, shape index: {}]
  %s3 = inlined_call_operand.vmem [shape: f32[2,3,64], index: 3, kind: input, shape index: {}]
  %s4 = inlined_call_operand.vmem [shape: f32[2,1,64], index: 4, kind: input, shape index: {}]
  %s5 = inlined_call_operand.vmem [shape: bf16[2,64,32], index: 5, kind: input, shape index: {}]
  %s6 = inlined_call_operand.vmem [shape: f32[2,1,32], index: 6, kind: input, shape index: {}]
  %s7 = inlined_call_operand.vmem [shape: bf16[2,32,128], index: 7, kind: input, shape index: {}]
  %s8 = inlined_call_operand.vmem [shape: f32[2,1,128], index: 8, kind: input, shape index: {}]
  %s9 = inlined_call_operand.vmem [shape: bf16[2,128,32], index: 9, kind: input, shape index: {}]
  %s10 = inlined_call_operand.vmem [shape: f32[2,1,32], index: 10, kind: input, shape index: {}]
  %s11 = inlined_call_operand.hbm [shape: f32[2,32,32], index: 11, kind: output, shape index: {}]
  %s12 = sld [smem:[#allocation0]]
  $region104: #{tpu_custom_call.1} parent=0
    _
  %s14 = ssub.s32 1, %s12
  %s15 = scalar_select 0, %s14, %s12
  $region1: #{tpu_custom_call.1} parent=0
    #allocation7 [shape = 'u8[32768]{0}', space=vmem, size = 0x8000, scoped, tag = 'output window, operand 0']
    #allocation8 [shape = 's32[2]{0}', space=sflag, size = 0x8, scoped, tag = 'scoped memory for tpu_custom_call.1']
    %16 = vsyncpa [#allocation8], 0
    %s17 = scalar_lea.sflag [#allocation8], 1
    %18 = vsyncpa %s17, 0
    loop: start=0, step=1, limit=10
    $region2: #{tpu_custom_call.1} parent=1 // loop_pre_header
      _
    $region3: #{tpu_custom_call.1} parent=1 // loop_header
      %s20 = sphi 0, %s24
      %p21 = scmp.ge.s32.totalorder %s20, 10
      %s27 = sphi 0, %s46
      %s28 = sphi 0, %s42
      %s29 = sphi 0, %s38
      %s30 = sphi 0, %s27
      %s31 = sphi 0, %s28
      %s32 = sphi 0, %s29
      %s33 = sphi 0, %s30
      %s34 = sphi 0, %s31
      %s35 = sphi 0, %s32
      %s49 = sphi 0, %s51
      %s52 = sphi 0, %s49
      %s53 = sphi 0, %s52
      %s69 = sphi 0, %s53
      %s75 = sphi 0, %s77
      %s78 = sphi 0, %s75
      %s79 = sphi 0, %s78
      %s95 = sphi 0, %s79
      %s101 = sphi 0, %s103
      %s104 = sphi 0, %s101
      %s105 = sphi 0, %s104
      %s121 = sphi 0, %s105
      %s127 = sphi 0, %s129
      %s130 = sphi 0, %s127
      %s131 = sphi 0, %s130
      %s147 = sphi 0, %s131
      %s153 = sphi 0, %s155
      %s156 = sphi 0, %s153
      %s157 = sphi 0, %s156
      %s173 = sphi 0, %s157
      %s179 = sphi 0, %s181
      %s182 = sphi 0, %s179
      %s183 = sphi 0, %s182
      %s199 = sphi 0, %s183
      %s205 = sphi 0, %s207
      %s208 = sphi 0, %s205
      %s209 = sphi 0, %s208
      %s225 = sphi 0, %s209
      %s231 = sphi 0, %s233
      %s234 = sphi 0, %s231
      %s235 = sphi 0, %s234
      %s251 = sphi 0, %s235
      %s257 = sphi 0, %s259
      %s260 = sphi 0, %s257
      %s261 = sphi 0, %s260
      %s277 = sphi 0, %s261
      %s283 = sphi 0, %s285
      %s286 = sphi 0, %s283
      %s287 = sphi 0, %s286
      %s303 = sphi 0, %s287
      %s309 = sphi 0, %s311
      %s312 = sphi 0, %s309
      %s313 = sphi 0, %s312
      %s329 = sphi 0, %s313
      %s335 = sphi 0, %s337
      %s338 = sphi 0, %s335
      %s339 = sphi 0, %s338
      %s355 = sphi 0, %s339
    $region4: #{tpu_custom_call.1} parent=1 // loop_header_branch
      %23 = sbr.rel (%p21) target = $region8
    $region5: #{tpu_custom_call.1} parent=1 // loop_body
      %s25 = ssub.s32 %s20, 1
      %s26 = ssub.s32 %s20, 2
      %s36 = sadd.s32 1, %s29
      %p37 = scmp.ge.s32.totalorder %s36, 2
      %s38 = scalar_select %p37, 0, %s36
      %s39 = sadd.s32 1, %s28
      %s40 = scalar_select %p37, %s39, %s28
      %p41 = scmp.ge.s32.totalorder %s40, 2
      %s42 = scalar_select %p41, 0, %s40
      %s43 = sadd.s32 1, %s27
      %s44 = scalar_select %p41, %s43, %s27
      %p45 = scmp.ge.s32.totalorder %s44, 2
      %s46 = scalar_select %p45, 0, %s44
      %s47 = ssub.s32 %s27, %s46
      %p48 = scmp.eq.s32.totalorder %s47, 0
      %s50 = sadd.s32 %s49, 1
      %s51 = scalar_select %p48, %s49, %s50
      %p54 = pneg %p48
      %p55 = scmp.eq.s32.totalorder %s20, 7
      %p56 = por %p54, %p55
      %p57 = scmp.ne.s32.totalorder %s49, %s52
      %p58 = scmp.eq.s32.totalorder %s20, 0
      %p59 = por %p57, %p58
      %p60 = scmp.ne.s32.totalorder %s49, %s52
      %p61 = scmp.eq.s32.totalorder %s25, 7
      %p62 = por %p60, %p61
      %p63 = scmp.ne.s32.totalorder %s52, %s53
      %p64 = scmp.eq.s32.totalorder %s25, 0
      %p65 = por %p63, %p64
      %p66 = scmp.ne.s32.totalorder %s52, %s53
      %p67 = scmp.eq.s32.totalorder %s26, 7
      %p68 = por %p66, %p67
      %p70 = scmp.ne.s32.totalorder %s53, %s69
      %p71 = scmp.eq.s32.totalorder %s26, 0
      %p72 = por %p70, %p71
      %s73 = ssub.s32 %s27, %s46
      %p74 = scmp.eq.s32.totalorder %s73, 0
      %s76 = sadd.s32 %s75, 1
      %s77 = scalar_select %p74, %s75, %s76
      %p80 = pneg %p74
      %p81 = scmp.eq.s32.totalorder %s20, 7
      %p82 = por %p80, %p81
      %p83 = scmp.ne.s32.totalorder %s75, %s78
      %p84 = scmp.eq.s32.totalorder %s20, 0
      %p85 = por %p83, %p84
      %p86 = scmp.ne.s32.totalorder %s75, %s78
      %p87 = scmp.eq.s32.totalorder %s25, 7
      %p88 = por %p86, %p87
      %p89 = scmp.ne.s32.totalorder %s78, %s79
      %p90 = scmp.eq.s32.totalorder %s25, 0
      %p91 = por %p89, %p90
      %p92 = scmp.ne.s32.totalorder %s78, %s79
      %p93 = scmp.eq.s32.totalorder %s26, 7
      %p94 = por %p92, %p93
      %p96 = scmp.ne.s32.totalorder %s79, %s95
      %p97 = scmp.eq.s32.totalorder %s26, 0
      %p98 = por %p96, %p97
      %s99 = ssub.s32 %s28, %s42
      %p100 = scmp.eq.s32.totalorder %s99, 0
      %s102 = sadd.s32 %s101, 1
      %s103 = scalar_select %p100, %s101, %s102
      %p106 = pneg %p100
      %p107 = scmp.eq.s32.totalorder %s20, 7
      %p108 = por %p106, %p107
      %p109 = scmp.ne.s32.totalorder %s101, %s104
      %p110 = scmp.eq.s32.totalorder %s20, 0
      %p111 = por %p109, %p110
      %p112 = scmp.ne.s32.totalorder %s101, %s104
      %p113 = scmp.eq.s32.totalorder %s25, 7
      %p114 = por %p112, %p113
      %p115 = scmp.ne.s32.totalorder %s104, %s105
      %p116 = scmp.eq.s32.totalorder %s25, 0
      %p117 = por %p115, %p116
      %p118 = scmp.ne.s32.totalorder %s104, %s105
      %p119 = scmp.eq.s32.totalorder %s26, 7
      %p120 = por %p118, %p119
      %p122 = scmp.ne.s32.totalorder %s105, %s121
      %p123 = scmp.eq.s32.totalorder %s26, 0
      %p124 = por %p122, %p123
      %s125 = ssub.s32 %s28, %s42
      %p126 = scmp.eq.s32.totalorder %s125, 0
      %s128 = sadd.s32 %s127, 1
      %s129 = scalar_select %p126, %s127, %s128
      %p132 = pneg %p126
      %p133 = scmp.eq.s32.totalorder %s20, 7
      %p134 = por %p132, %p133
      %p135 = scmp.ne.s32.totalorder %s127, %s130
      %p136 = scmp.eq.s32.totalorder %s20, 0
      %p137 = por %p135, %p136
      %p138 = scmp.ne.s32.totalorder %s127, %s130
      %p139 = scmp.eq.s32.totalorder %s25, 7
      %p140 = por %p138, %p139
      %p141 = scmp.ne.s32.totalorder %s130, %s131
      %p142 = scmp.eq.s32.totalorder %s25, 0
      %p143 = por %p141, %p142
      %p144 = scmp.ne.s32.totalorder %s130, %s131
      %p145 = scmp.eq.s32.totalorder %s26, 7
      %p146 = por %p144, %p145
      %p148 = scmp.ne.s32.totalorder %s131, %s147
      %p149 = scmp.eq.s32.totalorder %s26, 0
      %p150 = por %p148, %p149
      %s151 = ssub.s32 %s28, %s42
      %p152 = scmp.eq.s32.totalorder %s151, 0
      %s154 = sadd.s32 %s153, 1
      %s155 = scalar_select %p152, %s153, %s154
      %p158 = pneg %p152
      %p159 = scmp.eq.s32.totalorder %s20, 7
      %p160 = por %p158, %p159
      %p161 = scmp.ne.s32.totalorder %s153, %s156
      %p162 = scmp.eq.s32.totalorder %s20, 0
      %p163 = por %p161, %p162
      %p164 = scmp.ne.s32.totalorder %s153, %s156
      %p165 = scmp.eq.s32.totalorder %s25, 7
      %p166 = por %p164, %p165
      %p167 = scmp.ne.s32.totalorder %s156, %s157
      %p168 = scmp.eq.s32.totalorder %s25, 0
      %p169 = por %p167, %p168
      %p170 = scmp.ne.s32.totalorder %s156, %s157
      %p171 = scmp.eq.s32.totalorder %s26, 7
      %p172 = por %p170, %p171
      %p174 = scmp.ne.s32.totalorder %s157, %s173
      %p175 = scmp.eq.s32.totalorder %s26, 0
      %p176 = por %p174, %p175
      %s177 = ssub.s32 %s28, %s42
      %p178 = scmp.eq.s32.totalorder %s177, 0
      %s180 = sadd.s32 %s179, 1
      %s181 = scalar_select %p178, %s179, %s180
      %p184 = pneg %p178
      %p185 = scmp.eq.s32.totalorder %s20, 7
      %p186 = por %p184, %p185
      %p187 = scmp.ne.s32.totalorder %s179, %s182
      %p188 = scmp.eq.s32.totalorder %s20, 0
      %p189 = por %p187, %p188
      %p190 = scmp.ne.s32.totalorder %s179, %s182
      %p191 = scmp.eq.s32.totalorder %s25, 7
      %p192 = por %p190, %p191
      %p193 = scmp.ne.s32.totalorder %s182, %s183
      %p194 = scmp.eq.s32.totalorder %s25, 0
      %p195 = por %p193, %p194
      %p196 = scmp.ne.s32.totalorder %s182, %s183
      %p197 = scmp.eq.s32.totalorder %s26, 7
      %p198 = por %p196, %p197
      %p200 = scmp.ne.s32.totalorder %s183, %s199
      %p201 = scmp.eq.s32.totalorder %s26, 0
      %p202 = por %p200, %p201
      %s203 = ssub.s32 %s28, %s42
      %p204 = scmp.eq.s32.totalorder %s203, 0
      %s206 = sadd.s32 %s205, 1
      %s207 = scalar_select %p204, %s205, %s206
      %p210 = pneg %p204
      %p211 = scmp.eq.s32.totalorder %s20, 7
      %p212 = por %p210, %p211
      %p213 = scmp.ne.s32.totalorder %s205, %s208
      %p214 = scmp.eq.s32.totalorder %s20, 0
      %p215 = por %p213, %p214
      %p216 = scmp.ne.s32.totalorder %s205, %s208
      %p217 = scmp.eq.s32.totalorder %s25, 7
      %p218 = por %p216, %p217
      %p219 = scmp.ne.s32.totalorder %s208, %s209
      %p220 = scmp.eq.s32.totalorder %s25, 0
      %p221 = por %p219, %p220
      %p222 = scmp.ne.s32.totalorder %s208, %s209
      %p223 = scmp.eq.s32.totalorder %s26, 7
      %p224 = por %p222, %p223
      %p226 = scmp.ne.s32.totalorder %s209, %s225
      %p227 = scmp.eq.s32.totalorder %s26, 0
      %p228 = por %p226, %p227
      %s229 = ssub.s32 %s28, %s42
      %p230 = scmp.eq.s32.totalorder %s229, 0
      %s232 = sadd.s32 %s231, 1
      %s233 = scalar_select %p230, %s231, %s232
      %p236 = pneg %p230
      %p237 = scmp.eq.s32.totalorder %s20, 7
      %p238 = por %p236, %p237
      %p239 = scmp.ne.s32.totalorder %s231, %s234
      %p240 = scmp.eq.s32.totalorder %s20, 0
      %p241 = por %p239, %p240
      %p242 = scmp.ne.s32.totalorder %s231, %s234
      %p243 = scmp.eq.s32.totalorder %s25, 7
      %p244 = por %p242, %p243
      %p245 = scmp.ne.s32.totalorder %s234, %s235
      %p246 = scmp.eq.s32.totalorder %s25, 0
      %p247 = por %p245, %p246
      %p248 = scmp.ne.s32.totalorder %s234, %s235
      %p249 = scmp.eq.s32.totalorder %s26, 7
      %p250 = por %p248, %p249
      %p252 = scmp.ne.s32.totalorder %s235, %s251
      %p253 = scmp.eq.s32.totalorder %s26, 0
      %p254 = por %p252, %p253
      %s255 = ssub.s32 %s28, %s42
      %p256 = scmp.eq.s32.totalorder %s255, 0
      %s258 = sadd.s32 %s257, 1
      %s259 = scalar_select %p256, %s257, %s258
      %p262 = pneg %p256
      %p263 = scmp.eq.s32.totalorder %s20, 7
      %p264 = por %p262, %p263
      %p265 = scmp.ne.s32.totalorder %s257, %s260
      %p266 = scmp.eq.s32.totalorder %s20, 0
      %p267 = por %p265, %p266
      %p268 = scmp.ne.s32.totalorder %s257, %s260
      %p269 = scmp.eq.s32.totalorder %s25, 7
      %p270 = por %p268, %p269
      %p271 = scmp.ne.s32.totalorder %s260, %s261
      %p272 = scmp.eq.s32.totalorder %s25, 0
      %p273 = por %p271, %p272
      %p274 = scmp.ne.s32.totalorder %s260, %s261
      %p275 = scmp.eq.s32.totalorder %s26, 7
      %p276 = por %p274, %p275
      %p278 = scmp.ne.s32.totalorder %s261, %s277
      %p279 = scmp.eq.s32.totalorder %s26, 0
      %p280 = por %p278, %p279
      %s281 = ssub.s32 %s28, %s42
      %p282 = scmp.eq.s32.totalorder %s281, 0
      %s284 = sadd.s32 %s283, 1
      %s285 = scalar_select %p282, %s283, %s284
      %p288 = pneg %p282
      %p289 = scmp.eq.s32.totalorder %s20, 7
      %p290 = por %p288, %p289
      %p291 = scmp.ne.s32.totalorder %s283, %s286
      %p292 = scmp.eq.s32.totalorder %s20, 0
      %p293 = por %p291, %p292
      %p294 = scmp.ne.s32.totalorder %s283, %s286
      %p295 = scmp.eq.s32.totalorder %s25, 7
      %p296 = por %p294, %p295
      %p297 = scmp.ne.s32.totalorder %s286, %s287
      %p298 = scmp.eq.s32.totalorder %s25, 0
      %p299 = por %p297, %p298
      %p300 = scmp.ne.s32.totalorder %s286, %s287
      %p301 = scmp.eq.s32.totalorder %s26, 7
      %p302 = por %p300, %p301
      %p304 = scmp.ne.s32.totalorder %s287, %s303
      %p305 = scmp.eq.s32.totalorder %s26, 0
      %p306 = por %p304, %p305
      %s307 = ssub.s32 %s28, %s42
      %p308 = scmp.eq.s32.totalorder %s307, 0
      %s310 = sadd.s32 %s309, 1
      %s311 = scalar_select %p308, %s309, %s310
      %p314 = pneg %p308
      %p315 = scmp.eq.s32.totalorder %s20, 7
      %p316 = por %p314, %p315
      %p317 = scmp.ne.s32.totalorder %s309, %s312
      %p318 = scmp.eq.s32.totalorder %s20, 0
      %p319 = por %p317, %p318
      %p320 = scmp.ne.s32.totalorder %s309, %s312
      %p321 = scmp.eq.s32.totalorder %s25, 7
      %p322 = por %p320, %p321
      %p323 = scmp.ne.s32.totalorder %s312, %s313
      %p324 = scmp.eq.s32.totalorder %s25, 0
      %p325 = por %p323, %p324
      %p326 = scmp.ne.s32.totalorder %s312, %s313
      %p327 = scmp.eq.s32.totalorder %s26, 7
      %p328 = por %p326, %p327
      %p330 = scmp.ne.s32.totalorder %s313, %s329
      %p331 = scmp.eq.s32.totalorder %s26, 0
      %p332 = por %p330, %p331
      %s333 = ssub.s32 %s27, %s46
      %p334 = scmp.eq.s32.totalorder %s333, 0
      %s336 = sadd.s32 %s335, 1
      %s337 = scalar_select %p334, %s335, %s336
      %p340 = pneg %p334
      %p341 = scmp.eq.s32.totalorder %s20, 7
      %p342 = por %p340, %p341
      %p343 = scmp.ne.s32.totalorder %s335, %s338
      %p344 = scmp.eq.s32.totalorder %s20, 0
      %p345 = por %p343, %p344
      %p346 = scmp.ne.s32.totalorder %s335, %s338
      %p347 = scmp.eq.s32.totalorder %s25, 7
      %p348 = por %p346, %p347
      %p349 = scmp.ne.s32.totalorder %s338, %s339
      %p350 = scmp.eq.s32.totalorder %s25, 0
      %p351 = por %p349, %p350
      %p352 = scmp.ne.s32.totalorder %s338, %s339
      %p353 = scmp.eq.s32.totalorder %s26, 7
      %p354 = por %p352, %p353
      %p356 = scmp.ne.s32.totalorder %s339, %s355
      %p357 = scmp.eq.s32.totalorder %s26, 0
      %p358 = por %p356, %p357
      %p359 = scmp.le.s32.totalorder 1, %s20
      %p360 = scmp.lt.s32.totalorder %s20, 9
      %p361 = pnand %p359, %p360
      %p362 = pneg %p361
      // Predicated region
      $region9: #{tpu_custom_call.1} parent=5 // pred_check
        _
      $region10: #{tpu_custom_call.1} parent=5 // pred_check_branch
        %364 = sbr.rel (%p361) target = $region12
      $region11: #{tpu_custom_call.1} parent=5 // pred_region
        %s365 = ssub.s32 %s20, 1
      $region12: #{tpu_custom_call.1} parent=5 // pred_fallthru
        _
      %p366 = scmp.lt.s32.totalorder %s20, 8
      // Predicated region
      $region13: #{tpu_custom_call.1} parent=5 // pred_check
        %p367 = pneg %p366
      $region14: #{tpu_custom_call.1} parent=5 // pred_check_branch
        %369 = sbr.rel (%p367) target = $region16
      $region15: #{tpu_custom_call.1} parent=5 // pred_region
        // Predicated region
        $region17: #{tpu_custom_call.1} parent=15 // pred_check
          %p370 = pneg %p59
        $region18: #{tpu_custom_call.1} parent=15 // pred_check_branch
          %372 = sbr.rel (%p370) target = $region20
        $region19: #{tpu_custom_call.1} parent=15 // pred_region
          %p373 = scmp.lt.s32.totalorder %s27, 1
          %s374 = scalar_select %p373, %s27, 1
          %s375 = smul.addr %s374, 4
          %s376 = smul.addr %s375, 8
          %s377 = scalar_lea.vmem %s0, %s376
        $region20: #{tpu_custom_call.1} parent=15 // pred_fallthru
          _
        // Predicated region
        $region21: #{tpu_custom_call.1} parent=15 // pred_check
          %p378 = pneg %p85
        $region22: #{tpu_custom_call.1} parent=15 // pred_check_branch
          %380 = sbr.rel (%p378) target = $region24
        $region23: #{tpu_custom_call.1} parent=15 // pred_region
          %p381 = scmp.lt.s32.totalorder %s27, 1
          %s382 = scalar_select %p381, %s27, 1
          %s383 = smul.addr %s382, 4
          %s384 = smul.addr %s383, 8
          %s385 = scalar_lea.vmem %s1, %s384
        $region24: #{tpu_custom_call.1} parent=15 // pred_fallthru
          _
        // Predicated region
        $region25: #{tpu_custom_call.1} parent=15 // pred_check
          %p386 = pneg %p111
        $region26: #{tpu_custom_call.1} parent=15 // pred_check_branch
          %388 = sbr.rel (%p386) target = $region28
        $region27: #{tpu_custom_call.1} parent=15 // pred_region
          %p389 = scmp.lt.s32.totalorder %s28, 1
          %s390 = scalar_select %p389, %s28, 1
          %s391 = smul.addr %s390, 4
          %s392 = smul.addr %s391, 4
          %s393 = scalar_lea.vmem %s2, %s392
        $region28: #{tpu_custom_call.1} parent=15 // pred_fallthru
          _
        // Predicated region
        $region29: #{tpu_custom_call.1} parent=15 // pred_check
          %p394 = pneg %p137
        $region30: #{tpu_custom_call.1} parent=15 // pred_check_branch
          %396 = sbr.rel (%p394) target = $region32
        $region31: #{tpu_custom_call.1} parent=15 // pred_region
          %p397 = scmp.lt.s32.totalorder %s28, 1
          %s398 = scalar_select %p397, %s28, 1
          %s399 = smul.addr %s398, 4
          %s400 = scalar_lea.vmem %s3, %s399
        $region32: #{tpu_custom_call.1} parent=15 // pred_fallthru
          _
        // Predicated region
        $region33: #{tpu_custom_call.1} parent=15 // pred_check
          %p401 = pneg %p163
        $region34: #{tpu_custom_call.1} parent=15 // pred_check_branch
          %403 = sbr.rel (%p401) target = $region36
        $region35: #{tpu_custom_call.1} parent=15 // pred_region
          %p404 = scmp.lt.s32.totalorder %s28, 1
          %s405 = scalar_select %p404, %s28, 1
          %s406 = scalar_lea.vmem %s4, %s405
        $region36: #{tpu_custom_call.1} parent=15 // pred_fallthru
          _
        // Predicated region
        $region37: #{tpu_custom_call.1} parent=15 // pred_check
          %p407 = pneg %p189
        $region38: #{tpu_custom_call.1} parent=15 // pred_check_branch
          %409 = sbr.rel (%p407) target = $region40
        $region39: #{tpu_custom_call.1} parent=15 // pred_region
          %p410 = scmp.lt.s32.totalorder %s28, 1
          %s411 = scalar_select %p410, %s28, 1
          %s412 = smul.addr %s411, 8
          %s413 = smul.addr %s412, 4
          %s414 = scalar_lea.vmem %s5, %s413
        $region40: #{tpu_custom_call.1} parent=15 // pred_fallthru
          _
        // Predicated region
        $region41: #{tpu_custom_call.1} parent=15 // pred_check
          %p415 = pneg %p215
        $region42: #{tpu_custom_call.1} parent=15 // pred_check_branch
          %417 = sbr.rel (%p415) target = $region44
        $region43: #{tpu_custom_call.1} parent=15 // pred_region
          %p418 = scmp.lt.s32.totalorder %s28, 1
          %s419 = scalar_select %p418, %s28, 1
          %s420 = scalar_lea.vmem %s6, %s419
        $region44: #{tpu_custom_call.1} parent=15 // pred_fallthru
          _
        // Predicated region
        $region45: #{tpu_custom_call.1} parent=15 // pred_check
          %p421 = pneg %p241
        $region46: #{tpu_custom_call.1} parent=15 // pred_check_branch
          %423 = sbr.rel (%p421) target = $region48
        $region47: #{tpu_custom_call.1} parent=15 // pred_region
          %p424 = scmp.lt.s32.totalorder %s28, 1
          %s425 = scalar_select %p424, %s28, 1
          %s426 = smul.addr %s425, 4
          %s427 = smul.addr %s426, 4
          %s428 = scalar_lea.vmem %s7, %s427
        $region48: #{tpu_custom_call.1} parent=15 // pred_fallthru
          _
        // Predicated region
        $region49: #{tpu_custom_call.1} parent=15 // pred_check
          %p429 = pneg %p267
        $region50: #{tpu_custom_call.1} parent=15 // pred_check_branch
          %431 = sbr.rel (%p429) target = $region52
        $region51: #{tpu_custom_call.1} parent=15 // pred_region
          %p432 = scmp.lt.s32.totalorder %s28, 1
          %s433 = scalar_select %p432, %s28, 1
          %s434 = scalar_lea.vmem %s8, %s433
        $region52: #{tpu_custom_call.1} parent=15 // pred_fallthru
          _
        // Predicated region
        $region53: #{tpu_custom_call.1} parent=15 // pred_check
          %p435 = pneg %p293
        $region54: #{tpu_custom_call.1} parent=15 // pred_check_branch
          %437 = sbr.rel (%p435) target = $region56
        $region55: #{tpu_custom_call.1} parent=15 // pred_region
          %p438 = scmp.lt.s32.totalorder %s28, 1
          %s439 = scalar_select %p438, %s28, 1
          %s440 = smul.addr %s439, 16
          %s441 = smul.addr %s440, 4
          %s442 = scalar_lea.vmem %s9, %s441
        $region56: #{tpu_custom_call.1} parent=15 // pred_fallthru
          _
        // Predicated region
        $region57: #{tpu_custom_call.1} parent=15 // pred_check
          %p443 = pneg %p319
        $region58: #{tpu_custom_call.1} parent=15 // pred_check_branch
          %445 = sbr.rel (%p443) target = $region60
        $region59: #{tpu_custom_call.1} parent=15 // pred_region
          %p446 = scmp.lt.s32.totalorder %s28, 1
          %s447 = scalar_select %p446, %s28, 1
          %s448 = scalar_lea.vmem %s10, %s447
        $region60: #{tpu_custom_call.1} parent=15 // pred_fallthru
          _
      $region16: #{tpu_custom_call.1} parent=5 // pred_fallthru
        _
      %p449 = scmp.le.s32.totalorder 1, %s20
      %p450 = scmp.lt.s32.totalorder %s20, 9
      %p451 = pnand %p449, %p450
      %p452 = pneg %p451
      // Predicated region
      $region61: #{tpu_custom_call.1} parent=5 // pred_check
        _
      $region62: #{tpu_custom_call.1} parent=5 // pred_check_branch
        %454 = sbr.rel (%p451) target = $region64
      $region63: #{tpu_custom_call.1} parent=5 // pred_region
        %s455 = ssub.s32 %s20, 1
        %p456 = scmp.lt.s32.totalorder %s30, 1
        %s457 = scalar_select %p456, %s30, 1
        %s458 = smul.addr %s457, 4
        %s459 = smul.addr %s458, 8
        %s460 = scalar_lea.vmem %s0, %s459
        %p461 = pneg %p65
        %p462 = pneg %p62
        %p463 = scmp.lt.s32.totalorder %s30, 1
        %s464 = scalar_select %p463, %s30, 1
        %s465 = smul.addr %s464, 4
        %s466 = smul.addr %s465, 8
        %s467 = scalar_lea.vmem %s1, %s466
        %p468 = pneg %p91
        %p469 = pneg %p88
        %p470 = scmp.lt.s32.totalorder %s31, 1
        %s471 = scalar_select %p470, %s31, 1
        %s472 = smul.addr %s471, 4
        %s473 = smul.addr %s472, 4
        %s474 = scalar_lea.vmem %s2, %s473
        %p475 = pneg %p117
        %p476 = pneg %p114
        %p477 = scmp.lt.s32.totalorder %s31, 1
        %s478 = scalar_select %p477, %s31, 1
        %s479 = smul.addr %s478, 4
        %s480 = scalar_lea.vmem %s3, %s479
        %p481 = pneg %p143
        %p482 = pneg %p140
        %p483 = scmp.lt.s32.totalorder %s31, 1
        %s484 = scalar_select %p483, %s31, 1
        %s485 = scalar_lea.vmem %s4, %s484
        %p486 = pneg %p169
        %p487 = pneg %p166
        %p488 = scmp.lt.s32.totalorder %s31, 1
        %s489 = scalar_select %p488, %s31, 1
        %s490 = smul.addr %s489, 8
        %s491 = smul.addr %s490, 4
        %s492 = scalar_lea.vmem %s5, %s491
        %p493 = pneg %p195
        %p494 = pneg %p192
        %p495 = scmp.lt.s32.totalorder %s31, 1
        %s496 = scalar_select %p495, %s31, 1
        %s497 = scalar_lea.vmem %s6, %s496
        %p498 = pneg %p221
        %p499 = pneg %p218
        %p500 = scmp.lt.s32.totalorder %s31, 1
        %s501 = scalar_select %p500, %s31, 1
        %s502 = smul.addr %s501, 4
        %s503 = smul.addr %s502, 4
        %s504 = scalar_lea.vmem %s7, %s503
        %p505 = pneg %p247
        %p506 = pneg %p244
        %p507 = scmp.lt.s32.totalorder %s31, 1
        %s508 = scalar_select %p507, %s31, 1
        %s509 = scalar_lea.vmem %s8, %s508
        %p510 = pneg %p273
        %p511 = pneg %p270
        %p512 = scmp.lt.s32.totalorder %s31, 1
        %s513 = scalar_select %p512, %s31, 1
        %s514 = smul.addr %s513, 16
        %s515 = smul.addr %s514, 4
        %s516 = scalar_lea.vmem %s9, %s515
        %p517 = pneg %p299
        %p518 = pneg %p296
        %p519 = scmp.lt.s32.totalorder %s31, 1
        %s520 = scalar_select %p519, %s31, 1
        %s521 = scalar_lea.vmem %s10, %s520
        %p522 = pneg %p325
        %p523 = pneg %p322
        %p524 = pneg %p351
        %p525 = pneg %p348
        %s526 = sand.u32 %s338, 1
        %s527 = scalar_lea.sflag [#allocation8], %s526
        %s528 = sand.u32 %s338, 1
        %s529 = smul.addr %s528, 32
        %s530 = scalar_lea.vmem [#allocation7], %s529
        %p531 = scmp.lt.s32.totalorder %s30, 1
        %s532 = scalar_select %p531, %s30, 1
        %s533 = smul.addr %s532, 4
        %s534 = smul.addr %s533, 8
        %s535 = scalar_lea.vmem %s0, %s534
        %p536 = scmp.lt.s32.totalorder %s30, 1
        %s537 = scalar_select %p536, %s30, 1
        %s538 = smul.addr %s537, 4
        %s539 = smul.addr %s538, 8
        %s540 = scalar_lea.vmem %s1, %s539
        %p541 = scmp.lt.s32.totalorder %s31, 1
        %s542 = scalar_select %p541, %s31, 1
        %s543 = smul.addr %s542, 4
        %s544 = smul.addr %s543, 4
        %s545 = scalar_lea.vmem %s2, %s544
        %p546 = scmp.lt.s32.totalorder %s31, 1
        %s547 = scalar_select %p546, %s31, 1
        %s548 = smul.addr %s547, 4
        %s549 = scalar_lea.vmem %s3, %s548
        %p550 = scmp.lt.s32.totalorder %s31, 1
        %s551 = scalar_select %p550, %s31, 1
        %s552 = scalar_lea.vmem %s4, %s551
        %p553 = scmp.lt.s32.totalorder %s31, 1
        %s554 = scalar_select %p553, %s31, 1
        %s555 = smul.addr %s554, 8
        %s556 = smul.addr %s555, 4
        %s557 = scalar_lea.vmem %s5, %s556
        %p558 = scmp.lt.s32.totalorder %s31, 1
        %s559 = scalar_select %p558, %s31, 1
        %s560 = scalar_lea.vmem %s6, %s559
        %p561 = scmp.lt.s32.totalorder %s31, 1
        %s562 = scalar_select %p561, %s31, 1
        %s563 = smul.addr %s562, 4
        %s564 = smul.addr %s563, 4
        %s565 = scalar_lea.vmem %s7, %s564
        %p566 = scmp.lt.s32.totalorder %s31, 1
        %s567 = scalar_select %p566, %s31, 1
        %s568 = scalar_lea.vmem %s8, %s567
        %p569 = scmp.lt.s32.totalorder %s31, 1
        %s570 = scalar_select %p569, %s31, 1
        %s571 = smul.addr %s570, 16
        %s572 = smul.addr %s571, 4
        %s573 = scalar_lea.vmem %s9, %s572
        %p574 = scmp.lt.s32.totalorder %s31, 1
        %s575 = scalar_select %p574, %s31, 1
        %s576 = scalar_lea.vmem %s10, %s575
        %p578 = scmp.eq.s32.totalorder %s32, 0
        // Predicated region
        $region65: #{tpu_custom_call.1} parent=63 // pred_check
          %p579 = pneg %p578
        $region66: #{tpu_custom_call.1} parent=63 // pred_check_branch
          %581 = sbr.rel (%p579) target = $region68
        $region67: #{tpu_custom_call.1} parent=63 // pred_region
          %v582 = vld [vmem:[%s540] sm:$0xff]
          %v583 = vld [vmem:[%s540 + $0x8] sm:$0xff]
          %v584 = vld [vmem:[%s540 + $0x10] sm:$0xff]
          %v585 = vld [vmem:[%s540 + $0x18] sm:$0xff]
          %v586 = vld [vmem:[%s549] sm:$0x7]
          %588 = vset.pattern.permute.xlu0 0
          %589 = vperm.xlu0 %588, %v582
          %v590 = vpop.permute.xlu0 %589
          %593 = vset.pattern.permute.xlu0 0
          %594 = vperm.xlu0 %593, %v583
          %v595 = vpop.permute.xlu0 %594
          %598 = vset.pattern.permute.xlu0 0
          %599 = vperm.xlu0 %598, %v584
          %v600 = vpop.permute.xlu0 %599
          %603 = vset.pattern.permute.xlu0 0
          %604 = vperm.xlu0 %603, %v585
          %v605 = vpop.permute.xlu0 %604
          %v607 = vperm.slane %v586, 0
          %v608 = vmul.f32 %v590, %v607
          %v609 = vmul.f32 %v595, %v607
          %v610 = vmul.f32 %v600, %v607
          %v611 = vmul.f32 %v605, %v607
          %612 = vset.pattern.permute.xlu0 1
          %613 = vperm.xlu0 %612, %v582
          %v614 = vpop.permute.xlu0 %613
          %616 = vset.pattern.permute.xlu0 1
          %617 = vperm.xlu0 %616, %v583
          %v618 = vpop.permute.xlu0 %617
          %620 = vset.pattern.permute.xlu0 1
          %621 = vperm.xlu0 %620, %v584
          %v622 = vpop.permute.xlu0 %621
          %624 = vset.pattern.permute.xlu0 1
          %625 = vperm.xlu0 %624, %v585
          %v626 = vpop.permute.xlu0 %625
          %v628 = vperm.slane %v586, 1
          %v629 = vmul.f32 %v614, %v628
          %v630 = vmul.f32 %v618, %v628
          %v631 = vmul.f32 %v622, %v628
          %v632 = vmul.f32 %v626, %v628
          %v633 = vadd.f32 %v608, %v629
          %v634 = vadd.f32 %v609, %v630
          %v635 = vadd.f32 %v610, %v631
          %v636 = vadd.f32 %v611, %v632
          %637 = vset.pattern.permute.xlu0 2
          %638 = vperm.xlu0 %637, %v582
          %v639 = vpop.permute.xlu0 %638
          %641 = vset.pattern.permute.xlu0 2
          %642 = vperm.xlu0 %641, %v583
          %v643 = vpop.permute.xlu0 %642
          %645 = vset.pattern.permute.xlu0 2
          %646 = vperm.xlu0 %645, %v584
          %v647 = vpop.permute.xlu0 %646
          %649 = vset.pattern.permute.xlu0 2
          %650 = vperm.xlu0 %649, %v585
          %v651 = vpop.permute.xlu0 %650
          %v653 = vperm.slane %v586, 2
          %v654 = vmul.f32 %v639, %v653
          %v655 = vmul.f32 %v643, %v653
          %v656 = vmul.f32 %v647, %v653
          %v657 = vmul.f32 %v651, %v653
          %v658 = vadd.f32 %v633, %v654
          %v659 = vadd.f32 %v634, %v655
          %v660 = vadd.f32 %v635, %v656
          %v661 = vadd.f32 %v636, %v657
          %vm662 = vcmask 523264
          %663 = vst.msk [vmem:[#allocation6] sm:$0xff] %vm662, %v658
          %664 = vst.msk [vmem:[#allocation6 + $0x8] sm:$0xff] %vm662, %v659
          %665 = vst.msk [vmem:[#allocation6 + $0x10] sm:$0xff] %vm662, %v660
          %666 = vst.msk [vmem:[#allocation6 + $0x18] sm:$0xff] %vm662, %v661
          %p667 = scmp.eq.s32.totalorder %s31, 0
          // Predicated region
          $region69: #{tpu_custom_call.1} parent=67 // pred_check
            %p668 = pneg %p667
          $region70: #{tpu_custom_call.1} parent=67 // pred_check_branch
            %670 = sbr.rel (%p668) target = $region72
          $region71: #{tpu_custom_call.1} parent=67 // pred_region
            %v671 = vld [vmem:[%s535] sm:$0xff]
            %v672 = vld [vmem:[%s535 + $0x8] sm:$0xff]
            %v673 = vld [vmem:[%s535 + $0x10] sm:$0xff]
            %v674 = vld [vmem:[%s535 + $0x18] sm:$0xff]
            %v675 = vpack.c.bf16 %v672, %v671
            %v676 = vpack.c.bf16 %v674, %v673
            %v677 = vld [vmem:[%s545] sm:$0xf]
            %v678 = vld [vmem:[%s545 + $0x4] sm:$0xf]
            %v679 = vld [vmem:[%s545 + $0x8] sm:$0xf]
            %v680 = vld [vmem:[%s545 + $0xc] sm:$0xf]
            %v685 = vunpack.c.l.b16 %v677
            %v686 = vunpack.c.l.b16 %v678
            %v687 = vunpack.c.l.b16 %v679
            %v688 = vunpack.c.l.b16 %v680
            %v689 = vpack.c.b16 %v686, %v685
            %v690 = vpack.c.b16 %v688, %v687
            %vm693 = vcmask 261120
            %v695 = vsel %vm693, %v675, 0
            %v698 = vsel %vm693, %v676, 0
            %700 = vmatpush.bf16.msra.mxu0 0
            %701 = vmatpush.bf16.msra.mxu0 0
            %702 = vmatpush.bf16.msra.mxu0 0
            %703 = vmatpush.bf16.msra.mxu0 0
            %704 = vmatpush.bf16.msra.mxu0 0
            %705 = vmatpush.bf16.msra.mxu0 0
            %706 = vmatpush.bf16.msra.mxu0 %v690
            %707 = vmatpush.bf16.msra.mxu0 %v689
            %708 = vmatmul.bf16.gmra.mxu0 %v695
            %v709 = vpop.f32.mrf.mxu0
            %v710 = vadd.f32 0.0, %v709
            %v711 = vpop.f32.mrf.mxu0
            %v712 = vadd.f32 0.0, %v711
            %713 = vmatmul.bf16.gmra.mxu0 %v698
            %v714 = vpop.f32.mrf.mxu0
            %v715 = vadd.f32 0.0, %v714
            %v716 = vpop.f32.mrf.mxu0
            %v717 = vadd.f32 0.0, %v716
            %718 = vdwg.mxu0
            %719 = vst.msk [vmem:[#allocation3] sm:$0xff] %vm693, %v710
            %720 = vst.msk [vmem:[#allocation3 + $0x8] sm:$0xff] %vm693, %v712
            %721 = vst.msk [vmem:[#allocation3 + $0x10] sm:$0xff] %vm693, %v715
            %722 = vst.msk [vmem:[#allocation3 + $0x18] sm:$0xff] %vm693, %v717
            %727 = vrot.lane.b32.xlu0 %v710, 96
            %v728 = vpop.permute.xlu0 %727
            %729 = vrot.lane.b32.xlu0 %v712, 96
            %v730 = vpop.permute.xlu0 %729
            %731 = vrot.lane.b32.xlu0 %v715, 96
            %v732 = vpop.permute.xlu0 %731
            %733 = vrot.lane.b32.xlu0 %v717, 96
            %v734 = vpop.permute.xlu0 %733
            %739 = vst.msk [vmem:[#allocation4] sm:$0xff] %vm693, %v728
            %740 = vst.msk [vmem:[#allocation4 + $0x8] sm:$0xff] %vm693, %v730
            %741 = vst.msk [vmem:[#allocation4 + $0x10] sm:$0xff] %vm693, %v732
            %742 = vst.msk [vmem:[#allocation4 + $0x18] sm:$0xff] %vm693, %v734
            %743 = vrot.lane.b32.xlu0 %v710, 64
            %v744 = vpop.permute.xlu0 %743
            %745 = vrot.lane.b32.xlu0 %v712, 64
            %v746 = vpop.permute.xlu0 %745
            %747 = vrot.lane.b32.xlu0 %v715, 64
            %v748 = vpop.permute.xlu0 %747
            %749 = vrot.lane.b32.xlu0 %v717, 64
            %v750 = vpop.permute.xlu0 %749
            %755 = vst.msk [vmem:[#allocation5] sm:$0xff] %vm693, %v744
            %756 = vst.msk [vmem:[#allocation5 + $0x8] sm:$0xff] %vm693, %v746
            %757 = vst.msk [vmem:[#allocation5 + $0x10] sm:$0xff] %vm693, %v748
            %758 = vst.msk [vmem:[#allocation5 + $0x18] sm:$0xff] %vm693, %v750
          $region72: #{tpu_custom_call.1} parent=67 // pred_fallthru
            _
          %p759 = scmp.gt.s32.totalorder %s31, 0
          // Predicated region
          $region73: #{tpu_custom_call.1} parent=67 // pred_check
            %p760 = pneg %p759
          $region74: #{tpu_custom_call.1} parent=67 // pred_check_branch
            %762 = sbr.rel (%p760) target = $region76
          $region75: #{tpu_custom_call.1} parent=67 // pred_region
            %s763 = sadd.s32 %s31, 1
            %s764 = sand.u32 %s763, 1
            %s765 = smul.u32 %s764, 4
            %s766 = smul.addr %s765, 4
            %s767 = scalar_lea.vmem [#allocation2], %s766
            %v768 = vld [vmem:[%s767] sm:$0xf]
            %v769 = vld [vmem:[%s767 + $0x4] sm:$0xf]
            %v770 = vld [vmem:[%s767 + $0x8] sm:$0xf]
            %v771 = vld [vmem:[%s767 + $0xc] sm:$0xf]
            %v772 = vld [vmem:[%s545] sm:$0xf]
            %v773 = vld [vmem:[%s545 + $0x4] sm:$0xf]
            %v774 = vld [vmem:[%s545 + $0x8] sm:$0xf]
            %v775 = vld [vmem:[%s545 + $0xc] sm:$0xf]
            %v780 = vunpack.c.l.b16 %v768
            %v781 = vunpack.c.l.b16 %v769
            %v782 = vunpack.c.l.b16 %v770
            %v783 = vunpack.c.l.b16 %v771
            %v784 = vpack.c.b16 %v781, %v780
            %v785 = vpack.c.b16 %v783, %v782
            %v790 = vunpack.c.l.b16 %v772
            %v791 = vunpack.c.l.b16 %v773
            %v792 = vunpack.c.l.b16 %v774
            %v793 = vunpack.c.l.b16 %v775
            %v794 = vpack.c.b16 %v791, %v790
            %v795 = vpack.c.b16 %v793, %v792
            %vm798 = vcmask 261120
            %v800 = vsel %vm798, %v784, 0
            %v803 = vsel %vm798, %v785, 0
            %805 = vmatpush.bf16.msra.mxu0 0
            %806 = vmatpush.bf16.msra.mxu0 0
            %807 = vmatpush.bf16.msra.mxu0 0
            %808 = vmatpush.bf16.msra.mxu0 0
            %809 = vmatpush.bf16.msra.mxu0 0
            %810 = vmatpush.bf16.msra.mxu0 0
            %811 = vmatpush.bf16.msra.mxu0 %v795
            %812 = vmatpush.bf16.msra.mxu0 %v794
            %813 = vmatmul.bf16.gmra.mxu0 %v800
            %v814 = vpop.f32.mrf.mxu0
            %v815 = vadd.f32 0.0, %v814
            %v816 = vpop.f32.mrf.mxu0
            %v817 = vadd.f32 0.0, %v816
            %818 = vmatmul.bf16.gmra.mxu0 %v803
            %v819 = vpop.f32.mrf.mxu0
            %v820 = vadd.f32 0.0, %v819
            %v821 = vpop.f32.mrf.mxu0
            %v822 = vadd.f32 0.0, %v821
            %823 = vdwg.mxu0
            %824 = vst.msk [vmem:[#allocation3] sm:$0xff] %vm798, %v815
            %825 = vst.msk [vmem:[#allocation3 + $0x8] sm:$0xff] %vm798, %v817
            %826 = vst.msk [vmem:[#allocation3 + $0x10] sm:$0xff] %vm798, %v820
            %827 = vst.msk [vmem:[#allocation3 + $0x18] sm:$0xff] %vm798, %v822
            %832 = vrot.lane.b32.xlu0 %v815, 96
            %v833 = vpop.permute.xlu0 %832
            %834 = vrot.lane.b32.xlu0 %v817, 96
            %v835 = vpop.permute.xlu0 %834
            %836 = vrot.lane.b32.xlu0 %v820, 96
            %v837 = vpop.permute.xlu0 %836
            %838 = vrot.lane.b32.xlu0 %v822, 96
            %v839 = vpop.permute.xlu0 %838
            %844 = vst.msk [vmem:[#allocation4] sm:$0xff] %vm798, %v833
            %845 = vst.msk [vmem:[#allocation4 + $0x8] sm:$0xff] %vm798, %v835
            %846 = vst.msk [vmem:[#allocation4 + $0x10] sm:$0xff] %vm798, %v837
            %847 = vst.msk [vmem:[#allocation4 + $0x18] sm:$0xff] %vm798, %v839
            %848 = vrot.lane.b32.xlu0 %v815, 64
            %v849 = vpop.permute.xlu0 %848
            %850 = vrot.lane.b32.xlu0 %v817, 64
            %v851 = vpop.permute.xlu0 %850
            %852 = vrot.lane.b32.xlu0 %v820, 64
            %v853 = vpop.permute.xlu0 %852
            %854 = vrot.lane.b32.xlu0 %v822, 64
            %v855 = vpop.permute.xlu0 %854
            %860 = vst.msk [vmem:[#allocation5] sm:$0xff] %vm798, %v849
            %861 = vst.msk [vmem:[#allocation5 + $0x8] sm:$0xff] %vm798, %v851
            %862 = vst.msk [vmem:[#allocation5 + $0x10] sm:$0xff] %vm798, %v853
            %863 = vst.msk [vmem:[#allocation5 + $0x18] sm:$0xff] %vm798, %v855
          $region76: #{tpu_custom_call.1} parent=67 // pred_fallthru
            _
        $region68: #{tpu_custom_call.1} parent=63 // pred_fallthru
          _
        %s864 = smul.u32 %s32, 16
        %s865 = scalar_lea.vmem [#allocation3], %s864
        %v866 = vld [vmem:[%s865] sm:$0xff]
        %v867 = vld [vmem:[%s865 + $0x8] sm:$0xff]
        %s868 = scalar_lea.vmem [#allocation6], %s864
        %v869 = vld [vmem:[%s868] sm:$0xff]
        %v870 = vld [vmem:[%s868 + $0x8] sm:$0xff]
        %v871 = vld [vmem:[%s552] sm:$0x1]
        %v873 = vperm.slane %v871, 0
        %v875 = vadd.f32 %v869, %v873
        %v876 = vadd.f32 %v870, %v873
        %v877 = vld [vmem:[%s557] sm:$0xf]
        %v878 = vld [vmem:[%s557 + $0x4] sm:$0xf]
        %v879 = vld [vmem:[%s557 + $0x8] sm:$0xf]
        %v880 = vld [vmem:[%s557 + $0xc] sm:$0xf]
        %v881 = vld [vmem:[%s557 + $0x10] sm:$0xf]
        %v882 = vld [vmem:[%s557 + $0x14] sm:$0xf]
        %v883 = vld [vmem:[%s557 + $0x18] sm:$0xf]
        %v884 = vld [vmem:[%s557 + $0x1c] sm:$0xf]
        %v885 = vld [vmem:[%s560] sm:$0x1]
        %v886 = vld [vmem:[%s565] sm:$0xf]
        %v887 = vld [vmem:[%s565 + $0x4] sm:$0xf]
        %v888 = vld [vmem:[%s565 + $0x8] sm:$0xf]
        %v889 = vld [vmem:[%s565 + $0xc] sm:$0xf]
        %v890 = vld [vmem:[%s568] sm:$0x1]
        %v891 = vld [vmem:[%s573] sm:$0xf]
        %v892 = vld [vmem:[%s573 + $0x4] sm:$0xf]
        %v893 = vld [vmem:[%s573 + $0x8] sm:$0xf]
        %v894 = vld [vmem:[%s573 + $0xc] sm:$0xf]
        %v895 = vld [vmem:[%s573 + $0x10] sm:$0xf]
        %v896 = vld [vmem:[%s573 + $0x14] sm:$0xf]
        %v897 = vld [vmem:[%s573 + $0x18] sm:$0xf]
        %v898 = vld [vmem:[%s573 + $0x1c] sm:$0xf]
        %v899 = vld [vmem:[%s573 + $0x20] sm:$0xf]
        %v900 = vld [vmem:[%s573 + $0x24] sm:$0xf]
        %v901 = vld [vmem:[%s573 + $0x28] sm:$0xf]
        %v902 = vld [vmem:[%s573 + $0x2c] sm:$0xf]
        %v903 = vld [vmem:[%s573 + $0x30] sm:$0xf]
        %v904 = vld [vmem:[%s573 + $0x34] sm:$0xf]
        %v905 = vld [vmem:[%s573 + $0x38] sm:$0xf]
        %v906 = vld [vmem:[%s573 + $0x3c] sm:$0xf]
        %v907 = vld [vmem:[%s576] sm:$0x1]
        loop: start=0, step=1, limit=2
        $region77: #{tpu_custom_call.1} parent=63 // loop_pre_header
          _
        $region78: #{tpu_custom_call.1} parent=63 // loop_header
          %s909 = sphi 0, %s913
          %p910 = scmp.ge.s32.totalorder %s909, 2
          %v914 = vphi -inf, %v1910
          %v915 = vphi -inf, %v1911
          %v916 = vphi -inf, %v1912
          %v917 = vphi -inf, %v1913
          %v918 = vphi -inf, %v1914
          %v919 = vphi -inf, %v1915
          %v920 = vphi -inf, %v1916
          %v921 = vphi -inf, %v1917
          %v922 = vphi -inf, %v1918
          %v923 = vphi -inf, %v1919
          %v924 = vphi -inf, %v1920
          %v925 = vphi -inf, %v1921
          %v926 = vphi -inf, %v1922
          %v927 = vphi -inf, %v1923
          %v928 = vphi -inf, %v1924
          %v929 = vphi -inf, %v1925
          %v930 = vphi 0.0, %v2230
          %v931 = vphi 0.0, %v2231
          %v932 = vphi 0.0, %v2232
          %v933 = vphi 0.0, %v2233
          %v934 = vphi 0.0, %v2234
          %v935 = vphi 0.0, %v2235
          %v936 = vphi 0.0, %v2236
          %v937 = vphi 0.0, %v2237
          %v938 = vphi 0.0, %v2238
          %v939 = vphi 0.0, %v2239
          %v940 = vphi 0.0, %v2240
          %v941 = vphi 0.0, %v2241
          %v942 = vphi 0.0, %v2242
          %v943 = vphi 0.0, %v2243
          %v944 = vphi 0.0, %v2244
          %v945 = vphi 0.0, %v2245
          %v946 = vphi 0.0, %v2438
          %v947 = vphi 0.0, %v2439
          %v948 = vphi 0.0, %v2440
          %v949 = vphi 0.0, %v2441
          %v950 = vphi 0.0, %v2442
          %v951 = vphi 0.0, %v2443
          %v952 = vphi 0.0, %v2444
          %v953 = vphi 0.0, %v2445
          %v954 = vphi 0.0, %v2446
          %v955 = vphi 0.0, %v2447
          %v956 = vphi 0.0, %v2448
          %v957 = vphi 0.0, %v2449
          %v958 = vphi 0.0, %v2450
          %v959 = vphi 0.0, %v2451
          %v960 = vphi 0.0, %v2452
          %v961 = vphi 0.0, %v2453
        $region79: #{tpu_custom_call.1} parent=63 // loop_header_branch
          %912 = sbr.rel (%p910) target = $region83
        $region80: #{tpu_custom_call.1} parent=63 // loop_body
          %s962 = smul.u32 %s909, 16
          %s963 = scalar_lea.vmem [#allocation4], %s962
          %v964 = vld [vmem:[%s963] sm:$0xff]
          %v965 = vld [vmem:[%s963 + $0x8] sm:$0xff]
          %s966 = scalar_lea.vmem [#allocation5], %s962
          %v967 = vld [vmem:[%s966] sm:$0xff]
          %v968 = vld [vmem:[%s966 + $0x8] sm:$0xff]
          %s969 = scalar_lea.vmem [#allocation6], %s962
          %v970 = vld [vmem:[%s969] sm:$0xff]
          %v971 = vld [vmem:[%s969 + $0x8] sm:$0xff]
          %v974 = vrot.slane %v875, 1
          %v975 = vrot.slane %v875, 2
          %v976 = vrot.slane %v875, 3
          %v977 = vrot.slane %v875, 4
          %v978 = vrot.slane %v875, 5
          %v979 = vrot.slane %v875, 6
          %v980 = vrot.slane %v875, 7
          %v981 = vrot.slane %v876, 1
          %v982 = vrot.slane %v876, 2
          %v983 = vrot.slane %v876, 3
          %v984 = vrot.slane %v876, 4
          %v985 = vrot.slane %v876, 5
          %v986 = vrot.slane %v876, 6
          %v987 = vrot.slane %v876, 7
          %v988 = vperm.slane %v875, 0
          %v989 = vperm.slane %v974, 0
          %v990 = vperm.slane %v975, 0
          %v991 = vperm.slane %v976, 0
          %v992 = vperm.slane %v977, 0
          %v993 = vperm.slane %v978, 0
          %v994 = vperm.slane %v979, 0
          %v995 = vperm.slane %v980, 0
          %v996 = vperm.slane %v876, 0
          %v997 = vperm.slane %v981, 0
          %v998 = vperm.slane %v982, 0
          %v999 = vperm.slane %v983, 0
          %v1000 = vperm.slane %v984, 0
          %v1001 = vperm.slane %v985, 0
          %v1002 = vperm.slane %v986, 0
          %v1003 = vperm.slane %v987, 0
          %v1020 = vsub.f32 %v988, %v970
          %v1021 = vsub.f32 %v988, %v971
          %v1022 = vsub.f32 %v989, %v970
          %v1023 = vsub.f32 %v989, %v971
          %v1024 = vsub.f32 %v990, %v970
          %v1025 = vsub.f32 %v990, %v971
          %v1026 = vsub.f32 %v991, %v970
          %v1027 = vsub.f32 %v991, %v971
          %v1028 = vsub.f32 %v992, %v970
          %v1029 = vsub.f32 %v992, %v971
          %v1030 = vsub.f32 %v993, %v970
          %v1031 = vsub.f32 %v993, %v971
          %v1032 = vsub.f32 %v994, %v970
          %v1033 = vsub.f32 %v994, %v971
          %v1034 = vsub.f32 %v995, %v970
          %v1035 = vsub.f32 %v995, %v971
          %v1036 = vsub.f32 %v996, %v970
          %v1037 = vsub.f32 %v996, %v971
          %v1038 = vsub.f32 %v997, %v970
          %v1039 = vsub.f32 %v997, %v971
          %v1040 = vsub.f32 %v998, %v970
          %v1041 = vsub.f32 %v998, %v971
          %v1042 = vsub.f32 %v999, %v970
          %v1043 = vsub.f32 %v999, %v971
          %v1044 = vsub.f32 %v1000, %v970
          %v1045 = vsub.f32 %v1000, %v971
          %v1046 = vsub.f32 %v1001, %v970
          %v1047 = vsub.f32 %v1001, %v971
          %v1048 = vsub.f32 %v1002, %v970
          %v1049 = vsub.f32 %v1002, %v971
          %v1050 = vsub.f32 %v1003, %v970
          %v1051 = vsub.f32 %v1003, %v971
          %v1052 = vmax.f32 %v1020, 0.0
          %v1053 = vmax.f32 %v1021, 0.0
          %v1054 = vmax.f32 %v1022, 0.0
          %v1055 = vmax.f32 %v1023, 0.0
          %v1056 = vmax.f32 %v1024, 0.0
          %v1057 = vmax.f32 %v1025, 0.0
          %v1058 = vmax.f32 %v1026, 0.0
          %v1059 = vmax.f32 %v1027, 0.0
          %v1060 = vmax.f32 %v1028, 0.0
          %v1061 = vmax.f32 %v1029, 0.0
          %v1062 = vmax.f32 %v1030, 0.0
          %v1063 = vmax.f32 %v1031, 0.0
          %v1064 = vmax.f32 %v1032, 0.0
          %v1065 = vmax.f32 %v1033, 0.0
          %v1066 = vmax.f32 %v1034, 0.0
          %v1067 = vmax.f32 %v1035, 0.0
          %v1068 = vmax.f32 %v1036, 0.0
          %v1069 = vmax.f32 %v1037, 0.0
          %v1070 = vmax.f32 %v1038, 0.0
          %v1071 = vmax.f32 %v1039, 0.0
          %v1072 = vmax.f32 %v1040, 0.0
          %v1073 = vmax.f32 %v1041, 0.0
          %v1074 = vmax.f32 %v1042, 0.0
          %v1075 = vmax.f32 %v1043, 0.0
          %v1076 = vmax.f32 %v1044, 0.0
          %v1077 = vmax.f32 %v1045, 0.0
          %v1078 = vmax.f32 %v1046, 0.0
          %v1079 = vmax.f32 %v1047, 0.0
          %v1080 = vmax.f32 %v1048, 0.0
          %v1081 = vmax.f32 %v1049, 0.0
          %v1082 = vmax.f32 %v1050, 0.0
          %v1083 = vmax.f32 %v1051, 0.0
          %v1084 = vpack.c.bf16 %v1053, %v1052
          %v1085 = vpack.c.bf16 %v1055, %v1054
          %v1086 = vpack.c.bf16 %v1057, %v1056
          %v1087 = vpack.c.bf16 %v1059, %v1058
          %v1088 = vpack.c.bf16 %v1061, %v1060
          %v1089 = vpack.c.bf16 %v1063, %v1062
          %v1090 = vpack.c.bf16 %v1065, %v1064
          %v1091 = vpack.c.bf16 %v1067, %v1066
          %v1092 = vpack.c.bf16 %v1069, %v1068
          %v1093 = vpack.c.bf16 %v1071, %v1070
          %v1094 = vpack.c.bf16 %v1073, %v1072
          %v1095 = vpack.c.bf16 %v1075, %v1074
          %v1096 = vpack.c.bf16 %v1077, %v1076
          %v1097 = vpack.c.bf16 %v1079, %v1078
          %v1098 = vpack.c.bf16 %v1081, %v1080
          %v1099 = vpack.c.bf16 %v1083, %v1082
          %v1101 = vperm.slane %v885, 0
          %v1111 = vunpack.c.l.b16 %v877
          %v1112 = vunpack.c.l.b16 %v878
          %v1113 = vunpack.c.l.b16 %v879
          %v1114 = vunpack.c.l.b16 %v880
          %v1115 = vunpack.c.l.b16 %v881
          %v1116 = vunpack.c.l.b16 %v882
          %v1117 = vunpack.c.l.b16 %v883
          %v1118 = vunpack.c.l.b16 %v884
          %v1119 = vpack.c.b16 %v1112, %v1111
          %v1120 = vpack.c.b16 %v1114, %v1113
          %v1121 = vpack.c.b16 %v1116, %v1115
          %v1122 = vpack.c.b16 %v1118, %v1117
          %vm1127 = vcmask 523264
          %v1129 = vsel %vm1127, %v1084, 0
          %v1132 = vsel %vm1127, %v1085, 0
          %v1135 = vsel %vm1127, %v1086, 0
          %v1138 = vsel %vm1127, %v1087, 0
          %v1141 = vsel %vm1127, %v1088, 0
          %v1144 = vsel %vm1127, %v1089, 0
          %v1147 = vsel %vm1127, %v1090, 0
          %v1150 = vsel %vm1127, %v1091, 0
          %v1153 = vsel %vm1127, %v1092, 0
          %v1156 = vsel %vm1127, %v1093, 0
          %v1159 = vsel %vm1127, %v1094, 0
          %v1162 = vsel %vm1127, %v1095, 0
          %v1165 = vsel %vm1127, %v1096, 0
          %v1168 = vsel %vm1127, %v1097, 0
          %v1171 = vsel %vm1127, %v1098, 0
          %v1174 = vsel %vm1127, %v1099, 0
          %1176 = vmatpush.bf16.msra.mxu0 0
          %1177 = vmatpush.bf16.msra.mxu0 0
          %1178 = vmatpush.bf16.msra.mxu0 0
          %1179 = vmatpush.bf16.msra.mxu0 0
          %1180 = vmatpush.bf16.msra.mxu0 %v1122
          %1181 = vmatpush.bf16.msra.mxu0 %v1121
          %1182 = vmatpush.bf16.msra.mxu0 %v1120
          %1183 = vmatpush.bf16.msra.mxu0 %v1119
          %1184 = vmatmul.bf16.gmra.mxu0 %v1129
          %v1185 = vpop.f32.mrf.mxu0
          %v1186 = vadd.f32 %v1101, %v1185
          %v1187 = vpop.f32.mrf.mxu0
          %v1188 = vadd.f32 %v1101, %v1187
          %1189 = vmatmul.bf16.gmra.mxu0 %v1132
          %v1190 = vpop.f32.mrf.mxu0
          %v1191 = vadd.f32 %v1101, %v1190
          %v1192 = vpop.f32.mrf.mxu0
          %v1193 = vadd.f32 %v1101, %v1192
          %1194 = vmatmul.bf16.gmra.mxu0 %v1135
          %v1195 = vpop.f32.mrf.mxu0
          %v1196 = vadd.f32 %v1101, %v1195
          %v1197 = vpop.f32.mrf.mxu0
          %v1198 = vadd.f32 %v1101, %v1197
          %1199 = vmatmul.bf16.gmra.mxu0 %v1138
          %v1200 = vpop.f32.mrf.mxu0
          %v1201 = vadd.f32 %v1101, %v1200
          %v1202 = vpop.f32.mrf.mxu0
          %v1203 = vadd.f32 %v1101, %v1202
          %1204 = vmatmul.bf16.gmra.mxu0 %v1141
          %v1205 = vpop.f32.mrf.mxu0
          %v1206 = vadd.f32 %v1101, %v1205
          %v1207 = vpop.f32.mrf.mxu0
          %v1208 = vadd.f32 %v1101, %v1207
          %1209 = vmatmul.bf16.gmra.mxu0 %v1144
          %v1210 = vpop.f32.mrf.mxu0
          %v1211 = vadd.f32 %v1101, %v1210
          %v1212 = vpop.f32.mrf.mxu0
          %v1213 = vadd.f32 %v1101, %v1212
          %1214 = vmatmul.bf16.gmra.mxu0 %v1147
          %v1215 = vpop.f32.mrf.mxu0
          %v1216 = vadd.f32 %v1101, %v1215
          %v1217 = vpop.f32.mrf.mxu0
          %v1218 = vadd.f32 %v1101, %v1217
          %1219 = vmatmul.bf16.gmra.mxu0 %v1150
          %v1220 = vpop.f32.mrf.mxu0
          %v1221 = vadd.f32 %v1101, %v1220
          %v1222 = vpop.f32.mrf.mxu0
          %v1223 = vadd.f32 %v1101, %v1222
          %1224 = vmatmul.bf16.gmra.mxu0 %v1153
          %v1225 = vpop.f32.mrf.mxu0
          %v1226 = vadd.f32 %v1101, %v1225
          %v1227 = vpop.f32.mrf.mxu0
          %v1228 = vadd.f32 %v1101, %v1227
          %1229 = vmatmul.bf16.gmra.mxu0 %v1156
          %v1230 = vpop.f32.mrf.mxu0
          %v1231 = vadd.f32 %v1101, %v1230
          %v1232 = vpop.f32.mrf.mxu0
          %v1233 = vadd.f32 %v1101, %v1232
          %1234 = vmatmul.bf16.gmra.mxu0 %v1159
          %v1235 = vpop.f32.mrf.mxu0
          %v1236 = vadd.f32 %v1101, %v1235
          %v1237 = vpop.f32.mrf.mxu0
          %v1238 = vadd.f32 %v1101, %v1237
          %1239 = vmatmul.bf16.gmra.mxu0 %v1162
          %v1240 = vpop.f32.mrf.mxu0
          %v1241 = vadd.f32 %v1101, %v1240
          %v1242 = vpop.f32.mrf.mxu0
          %v1243 = vadd.f32 %v1101, %v1242
          %1244 = vmatmul.bf16.gmra.mxu0 %v1165
          %v1245 = vpop.f32.mrf.mxu0
          %v1246 = vadd.f32 %v1101, %v1245
          %v1247 = vpop.f32.mrf.mxu0
          %v1248 = vadd.f32 %v1101, %v1247
          %1249 = vmatmul.bf16.gmra.mxu0 %v1168
          %v1250 = vpop.f32.mrf.mxu0
          %v1251 = vadd.f32 %v1101, %v1250
          %v1252 = vpop.f32.mrf.mxu0
          %v1253 = vadd.f32 %v1101, %v1252
          %1254 = vmatmul.bf16.gmra.mxu0 %v1171
          %v1255 = vpop.f32.mrf.mxu0
          %v1256 = vadd.f32 %v1101, %v1255
          %v1257 = vpop.f32.mrf.mxu0
          %v1258 = vadd.f32 %v1101, %v1257
          %1259 = vmatmul.bf16.gmra.mxu0 %v1174
          %v1260 = vpop.f32.mrf.mxu0
          %v1261 = vadd.f32 %v1101, %v1260
          %v1262 = vpop.f32.mrf.mxu0
          %v1263 = vadd.f32 %v1101, %v1262
          %1264 = vdwg.mxu0
          %v1267 = vrot.slane %v866, 1
          %v1268 = vrot.slane %v866, 2
          %v1269 = vrot.slane %v866, 3
          %v1270 = vrot.slane %v866, 4
          %v1271 = vrot.slane %v866, 5
          %v1272 = vrot.slane %v866, 6
          %v1273 = vrot.slane %v866, 7
          %v1274 = vrot.slane %v867, 1
          %v1275 = vrot.slane %v867, 2
          %v1276 = vrot.slane %v867, 3
          %v1277 = vrot.slane %v867, 4
          %v1278 = vrot.slane %v867, 5
          %v1279 = vrot.slane %v867, 6
          %v1280 = vrot.slane %v867, 7
          %v1281 = vperm.slane %v866, 0
          %v1282 = vperm.slane %v1267, 0
          %v1283 = vperm.slane %v1268, 0
          %v1284 = vperm.slane %v1269, 0
          %v1285 = vperm.slane %v1270, 0
          %v1286 = vperm.slane %v1271, 0
          %v1287 = vperm.slane %v1272, 0
          %v1288 = vperm.slane %v1273, 0
          %v1289 = vperm.slane %v867, 0
          %v1290 = vperm.slane %v1274, 0
          %v1291 = vperm.slane %v1275, 0
          %v1292 = vperm.slane %v1276, 0
          %v1293 = vperm.slane %v1277, 0
          %v1294 = vperm.slane %v1278, 0
          %v1295 = vperm.slane %v1279, 0
          %v1296 = vperm.slane %v1280, 0
          %v1313 = vsub.f32 %v1281, %v964
          %v1314 = vsub.f32 %v1281, %v965
          %v1315 = vsub.f32 %v1282, %v964
          %v1316 = vsub.f32 %v1282, %v965
          %v1317 = vsub.f32 %v1283, %v964
          %v1318 = vsub.f32 %v1283, %v965
          %v1319 = vsub.f32 %v1284, %v964
          %v1320 = vsub.f32 %v1284, %v965
          %v1321 = vsub.f32 %v1285, %v964
          %v1322 = vsub.f32 %v1285, %v965
          %v1323 = vsub.f32 %v1286, %v964
          %v1324 = vsub.f32 %v1286, %v965
          %v1325 = vsub.f32 %v1287, %v964
          %v1326 = vsub.f32 %v1287, %v965
          %v1327 = vsub.f32 %v1288, %v964
          %v1328 = vsub.f32 %v1288, %v965
          %v1329 = vsub.f32 %v1289, %v964
          %v1330 = vsub.f32 %v1289, %v965
          %v1331 = vsub.f32 %v1290, %v964
          %v1332 = vsub.f32 %v1290, %v965
          %v1333 = vsub.f32 %v1291, %v964
          %v1334 = vsub.f32 %v1291, %v965
          %v1335 = vsub.f32 %v1292, %v964
          %v1336 = vsub.f32 %v1292, %v965
          %v1337 = vsub.f32 %v1293, %v964
          %v1338 = vsub.f32 %v1293, %v965
          %v1339 = vsub.f32 %v1294, %v964
          %v1340 = vsub.f32 %v1294, %v965
          %v1341 = vsub.f32 %v1295, %v964
          %v1342 = vsub.f32 %v1295, %v965
          %v1343 = vsub.f32 %v1296, %v964
          %v1344 = vsub.f32 %v1296, %v965
          %v1345 = vadd.f32 %v1313, %v1186
          %v1346 = vadd.f32 %v1314, %v1188
          %v1347 = vadd.f32 %v1315, %v1191
          %v1348 = vadd.f32 %v1316, %v1193
          %v1349 = vadd.f32 %v1317, %v1196
          %v1350 = vadd.f32 %v1318, %v1198
          %v1351 = vadd.f32 %v1319, %v1201
          %v1352 = vadd.f32 %v1320, %v1203
          %v1353 = vadd.f32 %v1321, %v1206
          %v1354 = vadd.f32 %v1322, %v1208
          %v1355 = vadd.f32 %v1323, %v1211
          %v1356 = vadd.f32 %v1324, %v1213
          %v1357 = vadd.f32 %v1325, %v1216
          %v1358 = vadd.f32 %v1326, %v1218
          %v1359 = vadd.f32 %v1327, %v1221
          %v1360 = vadd.f32 %v1328, %v1223
          %v1361 = vadd.f32 %v1329, %v1226
          %v1362 = vadd.f32 %v1330, %v1228
          %v1363 = vadd.f32 %v1331, %v1231
          %v1364 = vadd.f32 %v1332, %v1233
          %v1365 = vadd.f32 %v1333, %v1236
          %v1366 = vadd.f32 %v1334, %v1238
          %v1367 = vadd.f32 %v1335, %v1241
          %v1368 = vadd.f32 %v1336, %v1243
          %v1369 = vadd.f32 %v1337, %v1246
          %v1370 = vadd.f32 %v1338, %v1248
          %v1371 = vadd.f32 %v1339, %v1251
          %v1372 = vadd.f32 %v1340, %v1253
          %v1373 = vadd.f32 %v1341, %v1256
          %v1374 = vadd.f32 %v1342, %v1258
          %v1375 = vadd.f32 %v1343, %v1261
          %v1376 = vadd.f32 %v1344, %v1263
          %v1377 = vpack.c.bf16 %v1346, %v1345
          %v1378 = vpack.c.bf16 %v1348, %v1347
          %v1379 = vpack.c.bf16 %v1350, %v1349
          %v1380 = vpack.c.bf16 %v1352, %v1351
          %v1381 = vpack.c.bf16 %v1354, %v1353
          %v1382 = vpack.c.bf16 %v1356, %v1355
          %v1383 = vpack.c.bf16 %v1358, %v1357
          %v1384 = vpack.c.bf16 %v1360, %v1359
          %v1385 = vpack.c.bf16 %v1362, %v1361
          %v1386 = vpack.c.bf16 %v1364, %v1363
          %v1387 = vpack.c.bf16 %v1366, %v1365
          %v1388 = vpack.c.bf16 %v1368, %v1367
          %v1389 = vpack.c.bf16 %v1370, %v1369
          %v1390 = vpack.c.bf16 %v1372, %v1371
          %v1391 = vpack.c.bf16 %v1374, %v1373
          %v1392 = vpack.c.bf16 %v1376, %v1375
          %v1394 = vperm.slane %v890, 0
          %v1400 = vunpack.c.l.b16 %v886
          %v1401 = vunpack.c.l.b16 %v887
          %v1402 = vunpack.c.l.b16 %v888
          %v1403 = vunpack.c.l.b16 %v889
          %v1404 = vpack.c.b16 %v1401, %v1400
          %v1405 = vpack.c.b16 %v1403, %v1402
          %vm1408 = vcmask 261120
          %v1410 = vsel %vm1408, %v1377, 0
          %v1413 = vsel %vm1408, %v1378, 0
          %v1416 = vsel %vm1408, %v1379, 0
          %v1419 = vsel %vm1408, %v1380, 0
          %v1422 = vsel %vm1408, %v1381, 0
          %v1425 = vsel %vm1408, %v1382, 0
          %v1428 = vsel %vm1408, %v1383, 0
          %v1431 = vsel %vm1408, %v1384, 0
          %v1434 = vsel %vm1408, %v1385, 0
          %v1437 = vsel %vm1408, %v1386, 0
          %v1440 = vsel %vm1408, %v1387, 0
          %v1443 = vsel %vm1408, %v1388, 0
          %v1446 = vsel %vm1408, %v1389, 0
          %v1449 = vsel %vm1408, %v1390, 0
          %v1452 = vsel %vm1408, %v1391, 0
          %v1455 = vsel %vm1408, %v1392, 0
          %1457 = vmatpush.bf16.msra.mxu0 0
          %1458 = vmatpush.bf16.msra.mxu0 0
          %1459 = vmatpush.bf16.msra.mxu0 0
          %1460 = vmatpush.bf16.msra.mxu0 0
          %1461 = vmatpush.bf16.msra.mxu0 0
          %1462 = vmatpush.bf16.msra.mxu0 0
          %1463 = vmatpush.bf16.msra.mxu0 %v1405
          %1464 = vmatpush.bf16.msra.mxu0 %v1404
          %1465 = vmatmul.bf16.gmra.mxu0 %v1410
          %v1466 = vpop.f32.mrf.mxu0
          %v1467 = vadd.f32 %v1394, %v1466
          %v1468 = vpop.f32.mrf.mxu0
          %v1469 = vadd.f32 %v1394, %v1468
          %1470 = vmatmul.bf16.gmra.mxu0 %v1413
          %v1471 = vpop.f32.mrf.mxu0
          %v1472 = vadd.f32 %v1394, %v1471
          %v1473 = vpop.f32.mrf.mxu0
          %v1474 = vadd.f32 %v1394, %v1473
          %1475 = vmatmul.bf16.gmra.mxu0 %v1416
          %v1476 = vpop.f32.mrf.mxu0
          %v1477 = vadd.f32 %v1394, %v1476
          %v1478 = vpop.f32.mrf.mxu0
          %v1479 = vadd.f32 %v1394, %v1478
          %1480 = vmatmul.bf16.gmra.mxu0 %v1419
          %v1481 = vpop.f32.mrf.mxu0
          %v1482 = vadd.f32 %v1394, %v1481
          %v1483 = vpop.f32.mrf.mxu0
          %v1484 = vadd.f32 %v1394, %v1483
          %1485 = vmatmul.bf16.gmra.mxu0 %v1422
          %v1486 = vpop.f32.mrf.mxu0
          %v1487 = vadd.f32 %v1394, %v1486
          %v1488 = vpop.f32.mrf.mxu0
          %v1489 = vadd.f32 %v1394, %v1488
          %1490 = vmatmul.bf16.gmra.mxu0 %v1425
          %v1491 = vpop.f32.mrf.mxu0
          %v1492 = vadd.f32 %v1394, %v1491
          %v1493 = vpop.f32.mrf.mxu0
          %v1494 = vadd.f32 %v1394, %v1493
          %1495 = vmatmul.bf16.gmra.mxu0 %v1428
          %v1496 = vpop.f32.mrf.mxu0
          %v1497 = vadd.f32 %v1394, %v1496
          %v1498 = vpop.f32.mrf.mxu0
          %v1499 = vadd.f32 %v1394, %v1498
          %1500 = vmatmul.bf16.gmra.mxu0 %v1431
          %v1501 = vpop.f32.mrf.mxu0
          %v1502 = vadd.f32 %v1394, %v1501
          %v1503 = vpop.f32.mrf.mxu0
          %v1504 = vadd.f32 %v1394, %v1503
          %1505 = vmatmul.bf16.gmra.mxu0 %v1434
          %v1506 = vpop.f32.mrf.mxu0
          %v1507 = vadd.f32 %v1394, %v1506
          %v1508 = vpop.f32.mrf.mxu0
          %v1509 = vadd.f32 %v1394, %v1508
          %1510 = vmatmul.bf16.gmra.mxu0 %v1437
          %v1511 = vpop.f32.mrf.mxu0
          %v1512 = vadd.f32 %v1394, %v1511
          %v1513 = vpop.f32.mrf.mxu0
          %v1514 = vadd.f32 %v1394, %v1513
          %1515 = vmatmul.bf16.gmra.mxu0 %v1440
          %v1516 = vpop.f32.mrf.mxu0
          %v1517 = vadd.f32 %v1394, %v1516
          %v1518 = vpop.f32.mrf.mxu0
          %v1519 = vadd.f32 %v1394, %v1518
          %1520 = vmatmul.bf16.gmra.mxu0 %v1443
          %v1521 = vpop.f32.mrf.mxu0
          %v1522 = vadd.f32 %v1394, %v1521
          %v1523 = vpop.f32.mrf.mxu0
          %v1524 = vadd.f32 %v1394, %v1523
          %1525 = vmatmul.bf16.gmra.mxu0 %v1446
          %v1526 = vpop.f32.mrf.mxu0
          %v1527 = vadd.f32 %v1394, %v1526
          %v1528 = vpop.f32.mrf.mxu0
          %v1529 = vadd.f32 %v1394, %v1528
          %1530 = vmatmul.bf16.gmra.mxu0 %v1449
          %v1531 = vpop.f32.mrf.mxu0
          %v1532 = vadd.f32 %v1394, %v1531
          %v1533 = vpop.f32.mrf.mxu0
          %v1534 = vadd.f32 %v1394, %v1533
          %1535 = vmatmul.bf16.gmra.mxu0 %v1452
          %v1536 = vpop.f32.mrf.mxu0
          %v1537 = vadd.f32 %v1394, %v1536
          %v1538 = vpop.f32.mrf.mxu0
          %v1539 = vadd.f32 %v1394, %v1538
          %1540 = vmatmul.bf16.gmra.mxu0 %v1455
          %v1541 = vpop.f32.mrf.mxu0
          %v1542 = vadd.f32 %v1394, %v1541
          %v1543 = vpop.f32.mrf.mxu0
          %v1544 = vadd.f32 %v1394, %v1543
          %1545 = vdwg.mxu0
          %v1546 = vmax.f32 %v1467, 0.0
          %v1547 = vmax.f32 %v1469, 0.0
          %v1548 = vmax.f32 %v1472, 0.0
          %v1549 = vmax.f32 %v1474, 0.0
          %v1550 = vmax.f32 %v1477, 0.0
          %v1551 = vmax.f32 %v1479, 0.0
          %v1552 = vmax.f32 %v1482, 0.0
          %v1553 = vmax.f32 %v1484, 0.0
          %v1554 = vmax.f32 %v1487, 0.0
          %v1555 = vmax.f32 %v1489, 0.0
          %v1556 = vmax.f32 %v1492, 0.0
          %v1557 = vmax.f32 %v1494, 0.0
          %v1558 = vmax.f32 %v1497, 0.0
          %v1559 = vmax.f32 %v1499, 0.0
          %v1560 = vmax.f32 %v1502, 0.0
          %v1561 = vmax.f32 %v1504, 0.0
          %v1562 = vmax.f32 %v1507, 0.0
          %v1563 = vmax.f32 %v1509, 0.0
          %v1564 = vmax.f32 %v1512, 0.0
          %v1565 = vmax.f32 %v1514, 0.0
          %v1566 = vmax.f32 %v1517, 0.0
          %v1567 = vmax.f32 %v1519, 0.0
          %v1568 = vmax.f32 %v1522, 0.0
          %v1569 = vmax.f32 %v1524, 0.0
          %v1570 = vmax.f32 %v1527, 0.0
          %v1571 = vmax.f32 %v1529, 0.0
          %v1572 = vmax.f32 %v1532, 0.0
          %v1573 = vmax.f32 %v1534, 0.0
          %v1574 = vmax.f32 %v1537, 0.0
          %v1575 = vmax.f32 %v1539, 0.0
          %v1576 = vmax.f32 %v1542, 0.0
          %v1577 = vmax.f32 %v1544, 0.0
          %v1578 = vpack.c.bf16 %v1547, %v1546
          %v1579 = vpack.c.bf16 %v1549, %v1548
          %v1580 = vpack.c.bf16 %v1551, %v1550
          %v1581 = vpack.c.bf16 %v1553, %v1552
          %v1582 = vpack.c.bf16 %v1555, %v1554
          %v1583 = vpack.c.bf16 %v1557, %v1556
          %v1584 = vpack.c.bf16 %v1559, %v1558
          %v1585 = vpack.c.bf16 %v1561, %v1560
          %v1586 = vpack.c.bf16 %v1563, %v1562
          %v1587 = vpack.c.bf16 %v1565, %v1564
          %v1588 = vpack.c.bf16 %v1567, %v1566
          %v1589 = vpack.c.bf16 %v1569, %v1568
          %v1590 = vpack.c.bf16 %v1571, %v1570
          %v1591 = vpack.c.bf16 %v1573, %v1572
          %v1592 = vpack.c.bf16 %v1575, %v1574
          %v1593 = vpack.c.bf16 %v1577, %v1576
          %v1595 = vperm.slane %v907, 0
          %v1613 = vunpack.c.l.b16 %v891
          %v1614 = vunpack.c.l.b16 %v892
          %v1615 = vunpack.c.l.b16 %v893
          %v1616 = vunpack.c.l.b16 %v894
          %v1617 = vunpack.c.l.b16 %v895
          %v1618 = vunpack.c.l.b16 %v896
          %v1619 = vunpack.c.l.b16 %v897
          %v1620 = vunpack.c.l.b16 %v898
          %v1621 = vunpack.c.l.b16 %v899
          %v1622 = vunpack.c.l.b16 %v900
          %v1623 = vunpack.c.l.b16 %v901
          %v1624 = vunpack.c.l.b16 %v902
          %v1625 = vunpack.c.l.b16 %v903
          %v1626 = vunpack.c.l.b16 %v904
          %v1627 = vunpack.c.l.b16 %v905
          %v1628 = vunpack.c.l.b16 %v906
          %v1629 = vpack.c.b16 %v1614, %v1613
          %v1630 = vpack.c.b16 %v1616, %v1615
          %v1631 = vpack.c.b16 %v1618, %v1617
          %v1632 = vpack.c.b16 %v1620, %v1619
          %v1633 = vpack.c.b16 %v1622, %v1621
          %v1634 = vpack.c.b16 %v1624, %v1623
          %v1635 = vpack.c.b16 %v1626, %v1625
          %v1636 = vpack.c.b16 %v1628, %v1627
          %1645 = vmatpush.bf16.msra.mxu0 %v1636
          %1646 = vmatpush.bf16.msra.mxu0 %v1635
          %1647 = vmatpush.bf16.msra.mxu0 %v1634
          %1648 = vmatpush.bf16.msra.mxu0 %v1633
          %1649 = vmatpush.bf16.msra.mxu0 %v1632
          %1650 = vmatpush.bf16.msra.mxu0 %v1631
          %1651 = vmatpush.bf16.msra.mxu0 %v1630
          %1652 = vmatpush.bf16.msra.mxu0 %v1629
          %1653 = vmatmul.bf16.gmra.mxu0 %v1578
          %v1654 = vpop.f32.mrf.mxu0
          %v1655 = vadd.f32 %v1595, %v1654
          %v1656 = vpop.f32.mrf.mxu0
          %v1657 = vadd.f32 %v1595, %v1656
          %1658 = vmatmul.bf16.gmra.mxu0 %v1579
          %v1659 = vpop.f32.mrf.mxu0
          %v1660 = vadd.f32 %v1595, %v1659
          %v1661 = vpop.f32.mrf.mxu0
          %v1662 = vadd.f32 %v1595, %v1661
          %1663 = vmatmul.bf16.gmra.mxu0 %v1580
          %v1664 = vpop.f32.mrf.mxu0
          %v1665 = vadd.f32 %v1595, %v1664
          %v1666 = vpop.f32.mrf.mxu0
          %v1667 = vadd.f32 %v1595, %v1666
          %1668 = vmatmul.bf16.gmra.mxu0 %v1581
          %v1669 = vpop.f32.mrf.mxu0
          %v1670 = vadd.f32 %v1595, %v1669
          %v1671 = vpop.f32.mrf.mxu0
          %v1672 = vadd.f32 %v1595, %v1671
          %1673 = vmatmul.bf16.gmra.mxu0 %v1582
          %v1674 = vpop.f32.mrf.mxu0
          %v1675 = vadd.f32 %v1595, %v1674
          %v1676 = vpop.f32.mrf.mxu0
          %v1677 = vadd.f32 %v1595, %v1676
          %1678 = vmatmul.bf16.gmra.mxu0 %v1583
          %v1679 = vpop.f32.mrf.mxu0
          %v1680 = vadd.f32 %v1595, %v1679
          %v1681 = vpop.f32.mrf.mxu0
          %v1682 = vadd.f32 %v1595, %v1681
          %1683 = vmatmul.bf16.gmra.mxu0 %v1584
          %v1684 = vpop.f32.mrf.mxu0
          %v1685 = vadd.f32 %v1595, %v1684
          %v1686 = vpop.f32.mrf.mxu0
          %v1687 = vadd.f32 %v1595, %v1686
          %1688 = vmatmul.bf16.gmra.mxu0 %v1585
          %v1689 = vpop.f32.mrf.mxu0
          %v1690 = vadd.f32 %v1595, %v1689
          %v1691 = vpop.f32.mrf.mxu0
          %v1692 = vadd.f32 %v1595, %v1691
          %1693 = vmatmul.bf16.gmra.mxu0 %v1586
          %v1694 = vpop.f32.mrf.mxu0
          %v1695 = vadd.f32 %v1595, %v1694
          %v1696 = vpop.f32.mrf.mxu0
          %v1697 = vadd.f32 %v1595, %v1696
          %1698 = vmatmul.bf16.gmra.mxu0 %v1587
          %v1699 = vpop.f32.mrf.mxu0
          %v1700 = vadd.f32 %v1595, %v1699
          %v1701 = vpop.f32.mrf.mxu0
          %v1702 = vadd.f32 %v1595, %v1701
          %1703 = vmatmul.bf16.gmra.mxu0 %v1588
          %v1704 = vpop.f32.mrf.mxu0
          %v1705 = vadd.f32 %v1595, %v1704
          %v1706 = vpop.f32.mrf.mxu0
          %v1707 = vadd.f32 %v1595, %v1706
          %1708 = vmatmul.bf16.gmra.mxu0 %v1589
          %v1709 = vpop.f32.mrf.mxu0
          %v1710 = vadd.f32 %v1595, %v1709
          %v1711 = vpop.f32.mrf.mxu0
          %v1712 = vadd.f32 %v1595, %v1711
          %1713 = vmatmul.bf16.gmra.mxu0 %v1590
          %v1714 = vpop.f32.mrf.mxu0
          %v1715 = vadd.f32 %v1595, %v1714
          %v1716 = vpop.f32.mrf.mxu0
          %v1717 = vadd.f32 %v1595, %v1716
          %1718 = vmatmul.bf16.gmra.mxu0 %v1591
          %v1719 = vpop.f32.mrf.mxu0
          %v1720 = vadd.f32 %v1595, %v1719
          %v1721 = vpop.f32.mrf.mxu0
          %v1722 = vadd.f32 %v1595, %v1721
          %1723 = vmatmul.bf16.gmra.mxu0 %v1592
          %v1724 = vpop.f32.mrf.mxu0
          %v1725 = vadd.f32 %v1595, %v1724
          %v1726 = vpop.f32.mrf.mxu0
          %v1727 = vadd.f32 %v1595, %v1726
          %1728 = vmatmul.bf16.gmra.mxu0 %v1593
          %v1729 = vpop.f32.mrf.mxu0
          %v1730 = vadd.f32 %v1595, %v1729
          %v1731 = vpop.f32.mrf.mxu0
          %v1732 = vadd.f32 %v1595, %v1731
          %1733 = vdwg.mxu0
          %v1734 = vadd.f32 %v967, %v1186
          %v1735 = vadd.f32 %v968, %v1188
          %v1736 = vadd.f32 %v967, %v1191
          %v1737 = vadd.f32 %v968, %v1193
          %v1738 = vadd.f32 %v967, %v1196
          %v1739 = vadd.f32 %v968, %v1198
          %v1740 = vadd.f32 %v967, %v1201
          %v1741 = vadd.f32 %v968, %v1203
          %v1742 = vadd.f32 %v967, %v1206
          %v1743 = vadd.f32 %v968, %v1208
          %v1744 = vadd.f32 %v967, %v1211
          %v1745 = vadd.f32 %v968, %v1213
          %v1746 = vadd.f32 %v967, %v1216
          %v1747 = vadd.f32 %v968, %v1218
          %v1748 = vadd.f32 %v967, %v1221
          %v1749 = vadd.f32 %v968, %v1223
          %v1750 = vadd.f32 %v967, %v1226
          %v1751 = vadd.f32 %v968, %v1228
          %v1752 = vadd.f32 %v967, %v1231
          %v1753 = vadd.f32 %v968, %v1233
          %v1754 = vadd.f32 %v967, %v1236
          %v1755 = vadd.f32 %v968, %v1238
          %v1756 = vadd.f32 %v967, %v1241
          %v1757 = vadd.f32 %v968, %v1243
          %v1758 = vadd.f32 %v967, %v1246
          %v1759 = vadd.f32 %v968, %v1248
          %v1760 = vadd.f32 %v967, %v1251
          %v1761 = vadd.f32 %v968, %v1253
          %v1762 = vadd.f32 %v967, %v1256
          %v1763 = vadd.f32 %v968, %v1258
          %v1764 = vadd.f32 %v967, %v1261
          %v1765 = vadd.f32 %v968, %v1263
          %v1766 = vsel %vm1408, %v1655, -inf
          %v1767 = vsel %vm1408, %v1657, -inf
          %v1768 = vmax.f32 %v1766, %v1767
          %v1769 = vrot.slane %v1768, 4
          %v1770 = vmax.f32 %v1768, %v1769
          %v1771 = vrot.slane %v1770, 2
          %v1772 = vmax.f32 %v1770, %v1771
          %v1773 = vrot.slane %v1772, 1
          %v1774 = vmax.f32 %v1772, %v1773
          %v1775 = vsel %vm1408, %v1660, -inf
          %v1776 = vsel %vm1408, %v1662, -inf
          %v1777 = vmax.f32 %v1775, %v1776
          %v1778 = vrot.slane %v1777, 4
          %v1779 = vmax.f32 %v1777, %v1778
          %v1780 = vrot.slane %v1779, 2
          %v1781 = vmax.f32 %v1779, %v1780
          %v1782 = vrot.slane %v1781, 1
          %v1783 = vmax.f32 %v1781, %v1782
          %v1784 = vsel %vm1408, %v1665, -inf
          %v1785 = vsel %vm1408, %v1667, -inf
          %v1786 = vmax.f32 %v1784, %v1785
          %v1787 = vrot.slane %v1786, 4
          %v1788 = vmax.f32 %v1786, %v1787
          %v1789 = vrot.slane %v1788, 2
          %v1790 = vmax.f32 %v1788, %v1789
          %v1791 = vrot.slane %v1790, 1
          %v1792 = vmax.f32 %v1790, %v1791
          %v1793 = vsel %vm1408, %v1670, -inf
          %v1794 = vsel %vm1408, %v1672, -inf
          %v1795 = vmax.f32 %v1793, %v1794
          %v1796 = vrot.slane %v1795, 4
          %v1797 = vmax.f32 %v1795, %v1796
          %v1798 = vrot.slane %v1797, 2
          %v1799 = vmax.f32 %v1797, %v1798
          %v1800 = vrot.slane %v1799, 1
          %v1801 = vmax.f32 %v1799, %v1800
          %v1802 = vsel %vm1408, %v1675, -inf
          %v1803 = vsel %vm1408, %v1677, -inf
          %v1804 = vmax.f32 %v1802, %v1803
          %v1805 = vrot.slane %v1804, 4
          %v1806 = vmax.f32 %v1804, %v1805
          %v1807 = vrot.slane %v1806, 2
          %v1808 = vmax.f32 %v1806, %v1807
          %v1809 = vrot.slane %v1808, 1
          %v1810 = vmax.f32 %v1808, %v1809
          %v1811 = vsel %vm1408, %v1680, -inf
          %v1812 = vsel %vm1408, %v1682, -inf
          %v1813 = vmax.f32 %v1811, %v1812
          %v1814 = vrot.slane %v1813, 4
          %v1815 = vmax.f32 %v1813, %v1814
          %v1816 = vrot.slane %v1815, 2
          %v1817 = vmax.f32 %v1815, %v1816
          %v1818 = vrot.slane %v1817, 1
          %v1819 = vmax.f32 %v1817, %v1818
          %v1820 = vsel %vm1408, %v1685, -inf
          %v1821 = vsel %vm1408, %v1687, -inf
          %v1822 = vmax.f32 %v1820, %v1821
          %v1823 = vrot.slane %v1822, 4
          %v1824 = vmax.f32 %v1822, %v1823
          %v1825 = vrot.slane %v1824, 2
          %v1826 = vmax.f32 %v1824, %v1825
          %v1827 = vrot.slane %v1826, 1
          %v1828 = vmax.f32 %v1826, %v1827
          %v1829 = vsel %vm1408, %v1690, -inf
          %v1830 = vsel %vm1408, %v1692, -inf
          %v1831 = vmax.f32 %v1829, %v1830
          %v1832 = vrot.slane %v1831, 4
          %v1833 = vmax.f32 %v1831, %v1832
          %v1834 = vrot.slane %v1833, 2
          %v1835 = vmax.f32 %v1833, %v1834
          %v1836 = vrot.slane %v1835, 1
          %v1837 = vmax.f32 %v1835, %v1836
          %v1838 = vsel %vm1408, %v1695, -inf
          %v1839 = vsel %vm1408, %v1697, -inf
          %v1840 = vmax.f32 %v1838, %v1839
          %v1841 = vrot.slane %v1840, 4
          %v1842 = vmax.f32 %v1840, %v1841
          %v1843 = vrot.slane %v1842, 2
          %v1844 = vmax.f32 %v1842, %v1843
          %v1845 = vrot.slane %v1844, 1
          %v1846 = vmax.f32 %v1844, %v1845
          %v1847 = vsel %vm1408, %v1700, -inf
          %v1848 = vsel %vm1408, %v1702, -inf
          %v1849 = vmax.f32 %v1847, %v1848
          %v1850 = vrot.slane %v1849, 4
          %v1851 = vmax.f32 %v1849, %v1850
          %v1852 = vrot.slane %v1851, 2
          %v1853 = vmax.f32 %v1851, %v1852
          %v1854 = vrot.slane %v1853, 1
          %v1855 = vmax.f32 %v1853, %v1854
          %v1856 = vsel %vm1408, %v1705, -inf
          %v1857 = vsel %vm1408, %v1707, -inf
          %v1858 = vmax.f32 %v1856, %v1857
          %v1859 = vrot.slane %v1858, 4
          %v1860 = vmax.f32 %v1858, %v1859
          %v1861 = vrot.slane %v1860, 2
          %v1862 = vmax.f32 %v1860, %v1861
          %v1863 = vrot.slane %v1862, 1
          %v1864 = vmax.f32 %v1862, %v1863
          %v1865 = vsel %vm1408, %v1710, -inf
          %v1866 = vsel %vm1408, %v1712, -inf
          %v1867 = vmax.f32 %v1865, %v1866
          %v1868 = vrot.slane %v1867, 4
          %v1869 = vmax.f32 %v1867, %v1868
          %v1870 = vrot.slane %v1869, 2
          %v1871 = vmax.f32 %v1869, %v1870
          %v1872 = vrot.slane %v1871, 1
          %v1873 = vmax.f32 %v1871, %v1872
          %v1874 = vsel %vm1408, %v1715, -inf
          %v1875 = vsel %vm1408, %v1717, -inf
          %v1876 = vmax.f32 %v1874, %v1875
          %v1877 = vrot.slane %v1876, 4
          %v1878 = vmax.f32 %v1876, %v1877
          %v1879 = vrot.slane %v1878, 2
          %v1880 = vmax.f32 %v1878, %v1879
          %v1881 = vrot.slane %v1880, 1
          %v1882 = vmax.f32 %v1880, %v1881
          %v1883 = vsel %vm1408, %v1720, -inf
          %v1884 = vsel %vm1408, %v1722, -inf
          %v1885 = vmax.f32 %v1883, %v1884
          %v1886 = vrot.slane %v1885, 4
          %v1887 = vmax.f32 %v1885, %v1886
          %v1888 = vrot.slane %v1887, 2
          %v1889 = vmax.f32 %v1887, %v1888
          %v1890 = vrot.slane %v1889, 1
          %v1891 = vmax.f32 %v1889, %v1890
          %v1892 = vsel %vm1408, %v1725, -inf
          %v1893 = vsel %vm1408, %v1727, -inf
          %v1894 = vmax.f32 %v1892, %v1893
          %v1895 = vrot.slane %v1894, 4
          %v1896 = vmax.f32 %v1894, %v1895
          %v1897 = vrot.slane %v1896, 2
          %v1898 = vmax.f32 %v1896, %v1897
          %v1899 = vrot.slane %v1898, 1
          %v1900 = vmax.f32 %v1898, %v1899
          %v1901 = vsel %vm1408, %v1730, -inf
          %v1902 = vsel %vm1408, %v1732, -inf
          %v1903 = vmax.f32 %v1901, %v1902
          %v1904 = vrot.slane %v1903, 4
          %v1905 = vmax.f32 %v1903, %v1904
          %v1906 = vrot.slane %v1905, 2
          %v1907 = vmax.f32 %v1905, %v1906
          %v1908 = vrot.slane %v1907, 1
          %v1909 = vmax.f32 %v1907, %v1908
          %v1910 = vmax.f32 %v914, %v1774
          %v1911 = vmax.f32 %v915, %v1783
          %v1912 = vmax.f32 %v916, %v1792
          %v1913 = vmax.f32 %v917, %v1801
          %v1914 = vmax.f32 %v918, %v1810
          %v1915 = vmax.f32 %v919, %v1819
          %v1916 = vmax.f32 %v920, %v1828
          %v1917 = vmax.f32 %v921, %v1837
          %v1918 = vmax.f32 %v922, %v1846
          %v1919 = vmax.f32 %v923, %v1855
          %v1920 = vmax.f32 %v924, %v1864
          %v1921 = vmax.f32 %v925, %v1873
          %v1922 = vmax.f32 %v926, %v1882
          %v1923 = vmax.f32 %v927, %v1891
          %v1924 = vmax.f32 %v928, %v1900
          %v1925 = vmax.f32 %v929, %v1909
          %v1926 = vsub.f32 %v914, %v1910
          %v1927 = vsub.f32 %v915, %v1911
          %v1928 = vsub.f32 %v916, %v1912
          %v1929 = vsub.f32 %v917, %v1913
          %v1930 = vsub.f32 %v918, %v1914
          %v1931 = vsub.f32 %v919, %v1915
          %v1932 = vsub.f32 %v920, %v1916
          %v1933 = vsub.f32 %v921, %v1917
          %v1934 = vsub.f32 %v922, %v1918
          %v1935 = vsub.f32 %v923, %v1919
          %v1936 = vsub.f32 %v924, %v1920
          %v1937 = vsub.f32 %v925, %v1921
          %v1938 = vsub.f32 %v926, %v1922
          %v1939 = vsub.f32 %v927, %v1923
          %v1940 = vsub.f32 %v928, %v1924
          %v1941 = vsub.f32 %v929, %v1925
          %v1942 = vmul.f32 %v1926, 1.442695
          %v1943 = vpow.pop %v1942
          %v1944 = vmul.f32 %v1927, 1.442695
          %v1945 = vpow.pop %v1944
          %v1946 = vmul.f32 %v1928, 1.442695
          %v1947 = vpow.pop %v1946
          %v1948 = vmul.f32 %v1929, 1.442695
          %v1949 = vpow.pop %v1948
          %v1950 = vmul.f32 %v1930, 1.442695
          %v1951 = vpow.pop %v1950
          %v1952 = vmul.f32 %v1931, 1.442695
          %v1953 = vpow.pop %v1952
          %v1954 = vmul.f32 %v1932, 1.442695
          %v1955 = vpow.pop %v1954
          %v1956 = vmul.f32 %v1933, 1.442695
          %v1957 = vpow.pop %v1956
          %v1958 = vmul.f32 %v1934, 1.442695
          %v1959 = vpow.pop %v1958
          %v1960 = vmul.f32 %v1935, 1.442695
          %v1961 = vpow.pop %v1960
          %v1962 = vmul.f32 %v1936, 1.442695
          %v1963 = vpow.pop %v1962
          %v1964 = vmul.f32 %v1937, 1.442695
          %v1965 = vpow.pop %v1964
          %v1966 = vmul.f32 %v1938, 1.442695
          %v1967 = vpow.pop %v1966
          %v1968 = vmul.f32 %v1939, 1.442695
          %v1969 = vpow.pop %v1968
          %v1970 = vmul.f32 %v1940, 1.442695
          %v1971 = vpow.pop %v1970
          %v1972 = vmul.f32 %v1941, 1.442695
          %v1973 = vpow.pop %v1972
          %v1974 = vsub.f32 %v1655, %v1910
          %v1975 = vsub.f32 %v1657, %v1910
          %v1976 = vsub.f32 %v1660, %v1911
          %v1977 = vsub.f32 %v1662, %v1911
          %v1978 = vsub.f32 %v1665, %v1912
          %v1979 = vsub.f32 %v1667, %v1912
          %v1980 = vsub.f32 %v1670, %v1913
          %v1981 = vsub.f32 %v1672, %v1913
          %v1982 = vsub.f32 %v1675, %v1914
          %v1983 = vsub.f32 %v1677, %v1914
          %v1984 = vsub.f32 %v1680, %v1915
          %v1985 = vsub.f32 %v1682, %v1915
          %v1986 = vsub.f32 %v1685, %v1916
          %v1987 = vsub.f32 %v1687, %v1916
          %v1988 = vsub.f32 %v1690, %v1917
          %v1989 = vsub.f32 %v1692, %v1917
          %v1990 = vsub.f32 %v1695, %v1918
          %v1991 = vsub.f32 %v1697, %v1918
          %v1992 = vsub.f32 %v1700, %v1919
          %v1993 = vsub.f32 %v1702, %v1919
          %v1994 = vsub.f32 %v1705, %v1920
          %v1995 = vsub.f32 %v1707, %v1920
          %v1996 = vsub.f32 %v1710, %v1921
          %v1997 = vsub.f32 %v1712, %v1921
          %v1998 = vsub.f32 %v1715, %v1922
          %v1999 = vsub.f32 %v1717, %v1922
          %v2000 = vsub.f32 %v1720, %v1923
          %v2001 = vsub.f32 %v1722, %v1923
          %v2002 = vsub.f32 %v1725, %v1924
          %v2003 = vsub.f32 %v1727, %v1924
          %v2004 = vsub.f32 %v1730, %v1925
          %v2005 = vsub.f32 %v1732, %v1925
          %v2006 = vmul.f32 %v1974, 1.442695
          %v2007 = vpow.pop %v2006
          %v2008 = vmul.f32 %v1975, 1.442695
          %v2009 = vpow.pop %v2008
          %v2010 = vmul.f32 %v1976, 1.442695
          %v2011 = vpow.pop %v2010
          %v2012 = vmul.f32 %v1977, 1.442695
          %v2013 = vpow.pop %v2012
          %v2014 = vmul.f32 %v1978, 1.442695
          %v2015 = vpow.pop %v2014
          %v2016 = vmul.f32 %v1979, 1.442695
          %v2017 = vpow.pop %v2016
          %v2018 = vmul.f32 %v1980, 1.442695
          %v2019 = vpow.pop %v2018
          %v2020 = vmul.f32 %v1981, 1.442695
          %v2021 = vpow.pop %v2020
          %v2022 = vmul.f32 %v1982, 1.442695
          %v2023 = vpow.pop %v2022
          %v2024 = vmul.f32 %v1983, 1.442695
          %v2025 = vpow.pop %v2024
          %v2026 = vmul.f32 %v1984, 1.442695
          %v2027 = vpow.pop %v2026
          %v2028 = vmul.f32 %v1985, 1.442695
          %v2029 = vpow.pop %v2028
          %v2030 = vmul.f32 %v1986, 1.442695
          %v2031 = vpow.pop %v2030
          %v2032 = vmul.f32 %v1987, 1.442695
          %v2033 = vpow.pop %v2032
          %v2034 = vmul.f32 %v1988, 1.442695
          %v2035 = vpow.pop %v2034
          %v2036 = vmul.f32 %v1989, 1.442695
          %v2037 = vpow.pop %v2036
          %v2038 = vmul.f32 %v1990, 1.442695
          %v2039 = vpow.pop %v2038
          %v2040 = vmul.f32 %v1991, 1.442695
          %v2041 = vpow.pop %v2040
          %v2042 = vmul.f32 %v1992, 1.442695
          %v2043 = vpow.pop %v2042
          %v2044 = vmul.f32 %v1993, 1.442695
          %v2045 = vpow.pop %v2044
          %v2046 = vmul.f32 %v1994, 1.442695
          %v2047 = vpow.pop %v2046
          %v2048 = vmul.f32 %v1995, 1.442695
          %v2049 = vpow.pop %v2048
          %v2050 = vmul.f32 %v1996, 1.442695
          %v2051 = vpow.pop %v2050
          %v2052 = vmul.f32 %v1997, 1.442695
          %v2053 = vpow.pop %v2052
          %v2054 = vmul.f32 %v1998, 1.442695
          %v2055 = vpow.pop %v2054
          %v2056 = vmul.f32 %v1999, 1.442695
          %v2057 = vpow.pop %v2056
          %v2058 = vmul.f32 %v2000, 1.442695
          %v2059 = vpow.pop %v2058
          %v2060 = vmul.f32 %v2001, 1.442695
          %v2061 = vpow.pop %v2060
          %v2062 = vmul.f32 %v2002, 1.442695
          %v2063 = vpow.pop %v2062
          %v2064 = vmul.f32 %v2003, 1.442695
          %v2065 = vpow.pop %v2064
          %v2066 = vmul.f32 %v2004, 1.442695
          %v2067 = vpow.pop %v2066
          %v2068 = vmul.f32 %v2005, 1.442695
          %v2069 = vpow.pop %v2068
          %v2070 = vmul.f32 %v930, %v1943
          %v2071 = vmul.f32 %v931, %v1945
          %v2072 = vmul.f32 %v932, %v1947
          %v2073 = vmul.f32 %v933, %v1949
          %v2074 = vmul.f32 %v934, %v1951
          %v2075 = vmul.f32 %v935, %v1953
          %v2076 = vmul.f32 %v936, %v1955
          %v2077 = vmul.f32 %v937, %v1957
          %v2078 = vmul.f32 %v938, %v1959
          %v2079 = vmul.f32 %v939, %v1961
          %v2080 = vmul.f32 %v940, %v1963
          %v2081 = vmul.f32 %v941, %v1965
          %v2082 = vmul.f32 %v942, %v1967
          %v2083 = vmul.f32 %v943, %v1969
          %v2084 = vmul.f32 %v944, %v1971
          %v2085 = vmul.f32 %v945, %v1973
          %v2086 = vsel %vm1408, %v2007, 0.0
          %v2087 = vsel %vm1408, %v2009, 0.0
          %v2088 = vadd.f32 %v2086, %v2087
          %v2089 = vrot.slane %v2088, 4
          %v2090 = vadd.f32 %v2088, %v2089
          %v2091 = vrot.slane %v2090, 2
          %v2092 = vadd.f32 %v2090, %v2091
          %v2093 = vrot.slane %v2092, 1
          %v2094 = vadd.f32 %v2092, %v2093
          %v2095 = vsel %vm1408, %v2011, 0.0
          %v2096 = vsel %vm1408, %v2013, 0.0
          %v2097 = vadd.f32 %v2095, %v2096
          %v2098 = vrot.slane %v2097, 4
          %v2099 = vadd.f32 %v2097, %v2098
          %v2100 = vrot.slane %v2099, 2
          %v2101 = vadd.f32 %v2099, %v2100
          %v2102 = vrot.slane %v2101, 1
          %v2103 = vadd.f32 %v2101, %v2102
          %v2104 = vsel %vm1408, %v2015, 0.0
          %v2105 = vsel %vm1408, %v2017, 0.0
          %v2106 = vadd.f32 %v2104, %v2105
          %v2107 = vrot.slane %v2106, 4
          %v2108 = vadd.f32 %v2106, %v2107
          %v2109 = vrot.slane %v2108, 2
          %v2110 = vadd.f32 %v2108, %v2109
          %v2111 = vrot.slane %v2110, 1
          %v2112 = vadd.f32 %v2110, %v2111
          %v2113 = vsel %vm1408, %v2019, 0.0
          %v2114 = vsel %vm1408, %v2021, 0.0
          %v2115 = vadd.f32 %v2113, %v2114
          %v2116 = vrot.slane %v2115, 4
          %v2117 = vadd.f32 %v2115, %v2116
          %v2118 = vrot.slane %v2117, 2
          %v2119 = vadd.f32 %v2117, %v2118
          %v2120 = vrot.slane %v2119, 1
          %v2121 = vadd.f32 %v2119, %v2120
          %v2122 = vsel %vm1408, %v2023, 0.0
          %v2123 = vsel %vm1408, %v2025, 0.0
          %v2124 = vadd.f32 %v2122, %v2123
          %v2125 = vrot.slane %v2124, 4
          %v2126 = vadd.f32 %v2124, %v2125
          %v2127 = vrot.slane %v2126, 2
          %v2128 = vadd.f32 %v2126, %v2127
          %v2129 = vrot.slane %v2128, 1
          %v2130 = vadd.f32 %v2128, %v2129
          %v2131 = vsel %vm1408, %v2027, 0.0
          %v2132 = vsel %vm1408, %v2029, 0.0
          %v2133 = vadd.f32 %v2131, %v2132
          %v2134 = vrot.slane %v2133, 4
          %v2135 = vadd.f32 %v2133, %v2134
          %v2136 = vrot.slane %v2135, 2
          %v2137 = vadd.f32 %v2135, %v2136
          %v2138 = vrot.slane %v2137, 1
          %v2139 = vadd.f32 %v2137, %v2138
          %v2140 = vsel %vm1408, %v2031, 0.0
          %v2141 = vsel %vm1408, %v2033, 0.0
          %v2142 = vadd.f32 %v2140, %v2141
          %v2143 = vrot.slane %v2142, 4
          %v2144 = vadd.f32 %v2142, %v2143
          %v2145 = vrot.slane %v2144, 2
          %v2146 = vadd.f32 %v2144, %v2145
          %v2147 = vrot.slane %v2146, 1
          %v2148 = vadd.f32 %v2146, %v2147
          %v2149 = vsel %vm1408, %v2035, 0.0
          %v2150 = vsel %vm1408, %v2037, 0.0
          %v2151 = vadd.f32 %v2149, %v2150
          %v2152 = vrot.slane %v2151, 4
          %v2153 = vadd.f32 %v2151, %v2152
          %v2154 = vrot.slane %v2153, 2
          %v2155 = vadd.f32 %v2153, %v2154
          %v2156 = vrot.slane %v2155, 1
          %v2157 = vadd.f32 %v2155, %v2156
          %v2158 = vsel %vm1408, %v2039, 0.0
          %v2159 = vsel %vm1408, %v2041, 0.0
          %v2160 = vadd.f32 %v2158, %v2159
          %v2161 = vrot.slane %v2160, 4
          %v2162 = vadd.f32 %v2160, %v2161
          %v2163 = vrot.slane %v2162, 2
          %v2164 = vadd.f32 %v2162, %v2163
          %v2165 = vrot.slane %v2164, 1
          %v2166 = vadd.f32 %v2164, %v2165
          %v2167 = vsel %vm1408, %v2043, 0.0
          %v2168 = vsel %vm1408, %v2045, 0.0
          %v2169 = vadd.f32 %v2167, %v2168
          %v2170 = vrot.slane %v2169, 4
          %v2171 = vadd.f32 %v2169, %v2170
          %v2172 = vrot.slane %v2171, 2
          %v2173 = vadd.f32 %v2171, %v2172
          %v2174 = vrot.slane %v2173, 1
          %v2175 = vadd.f32 %v2173, %v2174
          %v2176 = vsel %vm1408, %v2047, 0.0
          %v2177 = vsel %vm1408, %v2049, 0.0
          %v2178 = vadd.f32 %v2176, %v2177
          %v2179 = vrot.slane %v2178, 4
          %v2180 = vadd.f32 %v2178, %v2179
          %v2181 = vrot.slane %v2180, 2
          %v2182 = vadd.f32 %v2180, %v2181
          %v2183 = vrot.slane %v2182, 1
          %v2184 = vadd.f32 %v2182, %v2183
          %v2185 = vsel %vm1408, %v2051, 0.0
          %v2186 = vsel %vm1408, %v2053, 0.0
          %v2187 = vadd.f32 %v2185, %v2186
          %v2188 = vrot.slane %v2187, 4
          %v2189 = vadd.f32 %v2187, %v2188
          %v2190 = vrot.slane %v2189, 2
          %v2191 = vadd.f32 %v2189, %v2190
          %v2192 = vrot.slane %v2191, 1
          %v2193 = vadd.f32 %v2191, %v2192
          %v2194 = vsel %vm1408, %v2055, 0.0
          %v2195 = vsel %vm1408, %v2057, 0.0
          %v2196 = vadd.f32 %v2194, %v2195
          %v2197 = vrot.slane %v2196, 4
          %v2198 = vadd.f32 %v2196, %v2197
          %v2199 = vrot.slane %v2198, 2
          %v2200 = vadd.f32 %v2198, %v2199
          %v2201 = vrot.slane %v2200, 1
          %v2202 = vadd.f32 %v2200, %v2201
          %v2203 = vsel %vm1408, %v2059, 0.0
          %v2204 = vsel %vm1408, %v2061, 0.0
          %v2205 = vadd.f32 %v2203, %v2204
          %v2206 = vrot.slane %v2205, 4
          %v2207 = vadd.f32 %v2205, %v2206
          %v2208 = vrot.slane %v2207, 2
          %v2209 = vadd.f32 %v2207, %v2208
          %v2210 = vrot.slane %v2209, 1
          %v2211 = vadd.f32 %v2209, %v2210
          %v2212 = vsel %vm1408, %v2063, 0.0
          %v2213 = vsel %vm1408, %v2065, 0.0
          %v2214 = vadd.f32 %v2212, %v2213
          %v2215 = vrot.slane %v2214, 4
          %v2216 = vadd.f32 %v2214, %v2215
          %v2217 = vrot.slane %v2216, 2
          %v2218 = vadd.f32 %v2216, %v2217
          %v2219 = vrot.slane %v2218, 1
          %v2220 = vadd.f32 %v2218, %v2219
          %v2221 = vsel %vm1408, %v2067, 0.0
          %v2222 = vsel %vm1408, %v2069, 0.0
          %v2223 = vadd.f32 %v2221, %v2222
          %v2224 = vrot.slane %v2223, 4
          %v2225 = vadd.f32 %v2223, %v2224
          %v2226 = vrot.slane %v2225, 2
          %v2227 = vadd.f32 %v2225, %v2226
          %v2228 = vrot.slane %v2227, 1
          %v2229 = vadd.f32 %v2227, %v2228
          %v2230 = vadd.f32 %v2070, %v2094
          %v2231 = vadd.f32 %v2071, %v2103
          %v2232 = vadd.f32 %v2072, %v2112
          %v2233 = vadd.f32 %v2073, %v2121
          %v2234 = vadd.f32 %v2074, %v2130
          %v2235 = vadd.f32 %v2075, %v2139
          %v2236 = vadd.f32 %v2076, %v2148
          %v2237 = vadd.f32 %v2077, %v2157
          %v2238 = vadd.f32 %v2078, %v2166
          %v2239 = vadd.f32 %v2079, %v2175
          %v2240 = vadd.f32 %v2080, %v2184
          %v2241 = vadd.f32 %v2081, %v2193
          %v2242 = vadd.f32 %v2082, %v2202
          %v2243 = vadd.f32 %v2083, %v2211
          %v2244 = vadd.f32 %v2084, %v2220
          %v2245 = vadd.f32 %v2085, %v2229
          %v2246 = vmul.f32 %v946, %v1943
          %v2247 = vmul.f32 %v947, %v1945
          %v2248 = vmul.f32 %v948, %v1947
          %v2249 = vmul.f32 %v949, %v1949
          %v2250 = vmul.f32 %v950, %v1951
          %v2251 = vmul.f32 %v951, %v1953
          %v2252 = vmul.f32 %v952, %v1955
          %v2253 = vmul.f32 %v953, %v1957
          %v2254 = vmul.f32 %v954, %v1959
          %v2255 = vmul.f32 %v955, %v1961
          %v2256 = vmul.f32 %v956, %v1963
          %v2257 = vmul.f32 %v957, %v1965
          %v2258 = vmul.f32 %v958, %v1967
          %v2259 = vmul.f32 %v959, %v1969
          %v2260 = vmul.f32 %v960, %v1971
          %v2261 = vmul.f32 %v961, %v1973
          %v2262 = vmul.f32 %v2007, %v1734
          %v2263 = vmul.f32 %v2009, %v1735
          %v2264 = vmul.f32 %v2011, %v1736
          %v2265 = vmul.f32 %v2013, %v1737
          %v2266 = vmul.f32 %v2015, %v1738
          %v2267 = vmul.f32 %v2017, %v1739
          %v2268 = vmul.f32 %v2019, %v1740
          %v2269 = vmul.f32 %v2021, %v1741
          %v2270 = vmul.f32 %v2023, %v1742
          %v2271 = vmul.f32 %v2025, %v1743
          %v2272 = vmul.f32 %v2027, %v1744
          %v2273 = vmul.f32 %v2029, %v1745
          %v2274 = vmul.f32 %v2031, %v1746
          %v2275 = vmul.f32 %v2033, %v1747
          %v2276 = vmul.f32 %v2035, %v1748
          %v2277 = vmul.f32 %v2037, %v1749
          %v2278 = vmul.f32 %v2039, %v1750
          %v2279 = vmul.f32 %v2041, %v1751
          %v2280 = vmul.f32 %v2043, %v1752
          %v2281 = vmul.f32 %v2045, %v1753
          %v2282 = vmul.f32 %v2047, %v1754
          %v2283 = vmul.f32 %v2049, %v1755
          %v2284 = vmul.f32 %v2051, %v1756
          %v2285 = vmul.f32 %v2053, %v1757
          %v2286 = vmul.f32 %v2055, %v1758
          %v2287 = vmul.f32 %v2057, %v1759
          %v2288 = vmul.f32 %v2059, %v1760
          %v2289 = vmul.f32 %v2061, %v1761
          %v2290 = vmul.f32 %v2063, %v1762
          %v2291 = vmul.f32 %v2065, %v1763
          %v2292 = vmul.f32 %v2067, %v1764
          %v2293 = vmul.f32 %v2069, %v1765
          %v2294 = vsel %vm1408, %v2262, 0.0
          %v2295 = vsel %vm1408, %v2263, 0.0
          %v2296 = vadd.f32 %v2294, %v2295
          %v2297 = vrot.slane %v2296, 4
          %v2298 = vadd.f32 %v2296, %v2297
          %v2299 = vrot.slane %v2298, 2
          %v2300 = vadd.f32 %v2298, %v2299
          %v2301 = vrot.slane %v2300, 1
          %v2302 = vadd.f32 %v2300, %v2301
          %v2303 = vsel %vm1408, %v2264, 0.0
          %v2304 = vsel %vm1408, %v2265, 0.0
          %v2305 = vadd.f32 %v2303, %v2304
          %v2306 = vrot.slane %v2305, 4
          %v2307 = vadd.f32 %v2305, %v2306
          %v2308 = vrot.slane %v2307, 2
          %v2309 = vadd.f32 %v2307, %v2308
          %v2310 = vrot.slane %v2309, 1
          %v2311 = vadd.f32 %v2309, %v2310
          %v2312 = vsel %vm1408, %v2266, 0.0
          %v2313 = vsel %vm1408, %v2267, 0.0
          %v2314 = vadd.f32 %v2312, %v2313
          %v2315 = vrot.slane %v2314, 4
          %v2316 = vadd.f32 %v2314, %v2315
          %v2317 = vrot.slane %v2316, 2
          %v2318 = vadd.f32 %v2316, %v2317
          %v2319 = vrot.slane %v2318, 1
          %v2320 = vadd.f32 %v2318, %v2319
          %v2321 = vsel %vm1408, %v2268, 0.0
          %v2322 = vsel %vm1408, %v2269, 0.0
          %v2323 = vadd.f32 %v2321, %v2322
          %v2324 = vrot.slane %v2323, 4
          %v2325 = vadd.f32 %v2323, %v2324
          %v2326 = vrot.slane %v2325, 2
          %v2327 = vadd.f32 %v2325, %v2326
          %v2328 = vrot.slane %v2327, 1
          %v2329 = vadd.f32 %v2327, %v2328
          %v2330 = vsel %vm1408, %v2270, 0.0
          %v2331 = vsel %vm1408, %v2271, 0.0
          %v2332 = vadd.f32 %v2330, %v2331
          %v2333 = vrot.slane %v2332, 4
          %v2334 = vadd.f32 %v2332, %v2333
          %v2335 = vrot.slane %v2334, 2
          %v2336 = vadd.f32 %v2334, %v2335
          %v2337 = vrot.slane %v2336, 1
          %v2338 = vadd.f32 %v2336, %v2337
          %v2339 = vsel %vm1408, %v2272, 0.0
          %v2340 = vsel %vm1408, %v2273, 0.0
          %v2341 = vadd.f32 %v2339, %v2340
          %v2342 = vrot.slane %v2341, 4
          %v2343 = vadd.f32 %v2341, %v2342
          %v2344 = vrot.slane %v2343, 2
          %v2345 = vadd.f32 %v2343, %v2344
          %v2346 = vrot.slane %v2345, 1
          %v2347 = vadd.f32 %v2345, %v2346
          %v2348 = vsel %vm1408, %v2274, 0.0
          %v2349 = vsel %vm1408, %v2275, 0.0
          %v2350 = vadd.f32 %v2348, %v2349
          %v2351 = vrot.slane %v2350, 4
          %v2352 = vadd.f32 %v2350, %v2351
          %v2353 = vrot.slane %v2352, 2
          %v2354 = vadd.f32 %v2352, %v2353
          %v2355 = vrot.slane %v2354, 1
          %v2356 = vadd.f32 %v2354, %v2355
          %v2357 = vsel %vm1408, %v2276, 0.0
          %v2358 = vsel %vm1408, %v2277, 0.0
          %v2359 = vadd.f32 %v2357, %v2358
          %v2360 = vrot.slane %v2359, 4
          %v2361 = vadd.f32 %v2359, %v2360
          %v2362 = vrot.slane %v2361, 2
          %v2363 = vadd.f32 %v2361, %v2362
          %v2364 = vrot.slane %v2363, 1
          %v2365 = vadd.f32 %v2363, %v2364
          %v2366 = vsel %vm1408, %v2278, 0.0
          %v2367 = vsel %vm1408, %v2279, 0.0
          %v2368 = vadd.f32 %v2366, %v2367
          %v2369 = vrot.slane %v2368, 4
          %v2370 = vadd.f32 %v2368, %v2369
          %v2371 = vrot.slane %v2370, 2
          %v2372 = vadd.f32 %v2370, %v2371
          %v2373 = vrot.slane %v2372, 1
          %v2374 = vadd.f32 %v2372, %v2373
          %v2375 = vsel %vm1408, %v2280, 0.0
          %v2376 = vsel %vm1408, %v2281, 0.0
          %v2377 = vadd.f32 %v2375, %v2376
          %v2378 = vrot.slane %v2377, 4
          %v2379 = vadd.f32 %v2377, %v2378
          %v2380 = vrot.slane %v2379, 2
          %v2381 = vadd.f32 %v2379, %v2380
          %v2382 = vrot.slane %v2381, 1
          %v2383 = vadd.f32 %v2381, %v2382
          %v2384 = vsel %vm1408, %v2282, 0.0
          %v2385 = vsel %vm1408, %v2283, 0.0
          %v2386 = vadd.f32 %v2384, %v2385
          %v2387 = vrot.slane %v2386, 4
          %v2388 = vadd.f32 %v2386, %v2387
          %v2389 = vrot.slane %v2388, 2
          %v2390 = vadd.f32 %v2388, %v2389
          %v2391 = vrot.slane %v2390, 1
          %v2392 = vadd.f32 %v2390, %v2391
          %v2393 = vsel %vm1408, %v2284, 0.0
          %v2394 = vsel %vm1408, %v2285, 0.0
          %v2395 = vadd.f32 %v2393, %v2394
          %v2396 = vrot.slane %v2395, 4
          %v2397 = vadd.f32 %v2395, %v2396
          %v2398 = vrot.slane %v2397, 2
          %v2399 = vadd.f32 %v2397, %v2398
          %v2400 = vrot.slane %v2399, 1
          %v2401 = vadd.f32 %v2399, %v2400
          %v2402 = vsel %vm1408, %v2286, 0.0
          %v2403 = vsel %vm1408, %v2287, 0.0
          %v2404 = vadd.f32 %v2402, %v2403
          %v2405 = vrot.slane %v2404, 4
          %v2406 = vadd.f32 %v2404, %v2405
          %v2407 = vrot.slane %v2406, 2
          %v2408 = vadd.f32 %v2406, %v2407
          %v2409 = vrot.slane %v2408, 1
          %v2410 = vadd.f32 %v2408, %v2409
          %v2411 = vsel %vm1408, %v2288, 0.0
          %v2412 = vsel %vm1408, %v2289, 0.0
          %v2413 = vadd.f32 %v2411, %v2412
          %v2414 = vrot.slane %v2413, 4
          %v2415 = vadd.f32 %v2413, %v2414
          %v2416 = vrot.slane %v2415, 2
          %v2417 = vadd.f32 %v2415, %v2416
          %v2418 = vrot.slane %v2417, 1
          %v2419 = vadd.f32 %v2417, %v2418
          %v2420 = vsel %vm1408, %v2290, 0.0
          %v2421 = vsel %vm1408, %v2291, 0.0
          %v2422 = vadd.f32 %v2420, %v2421
          %v2423 = vrot.slane %v2422, 4
          %v2424 = vadd.f32 %v2422, %v2423
          %v2425 = vrot.slane %v2424, 2
          %v2426 = vadd.f32 %v2424, %v2425
          %v2427 = vrot.slane %v2426, 1
          %v2428 = vadd.f32 %v2426, %v2427
          %v2429 = vsel %vm1408, %v2292, 0.0
          %v2430 = vsel %vm1408, %v2293, 0.0
          %v2431 = vadd.f32 %v2429, %v2430
          %v2432 = vrot.slane %v2431, 4
          %v2433 = vadd.f32 %v2431, %v2432
          %v2434 = vrot.slane %v2433, 2
          %v2435 = vadd.f32 %v2433, %v2434
          %v2436 = vrot.slane %v2435, 1
          %v2437 = vadd.f32 %v2435, %v2436
          %v2438 = vadd.f32 %v2246, %v2302
          %v2439 = vadd.f32 %v2247, %v2311
          %v2440 = vadd.f32 %v2248, %v2320
          %v2441 = vadd.f32 %v2249, %v2329
          %v2442 = vadd.f32 %v2250, %v2338
          %v2443 = vadd.f32 %v2251, %v2347
          %v2444 = vadd.f32 %v2252, %v2356
          %v2445 = vadd.f32 %v2253, %v2365
          %v2446 = vadd.f32 %v2254, %v2374
          %v2447 = vadd.f32 %v2255, %v2383
          %v2448 = vadd.f32 %v2256, %v2392
          %v2449 = vadd.f32 %v2257, %v2401
          %v2450 = vadd.f32 %v2258, %v2410
          %v2451 = vadd.f32 %v2259, %v2419
          %v2452 = vadd.f32 %v2260, %v2428
          %v2453 = vadd.f32 %v2261, %v2437
        $region81: #{tpu_custom_call.1} parent=63 // loop_footer
          %s913 = sadd.s32 1, %s909
        $region82: #{tpu_custom_call.1} parent=63 // loop_footer_branch
          %908 = sbr.rel target = $region78
        $region83: #{tpu_custom_call.1} parent=63 // loop_exit
          _
        %v2454 = vrcp.pop %v930
        %v2455 = vrcp.pop %v931
        %v2456 = vrcp.pop %v932
        %v2457 = vrcp.pop %v933
        %v2458 = vrcp.pop %v934
        %v2459 = vrcp.pop %v935
        %v2460 = vrcp.pop %v936
        %v2461 = vrcp.pop %v937
        %v2462 = vrcp.pop %v938
        %v2463 = vrcp.pop %v939
        %v2464 = vrcp.pop %v940
        %v2465 = vrcp.pop %v941
        %v2466 = vrcp.pop %v942
        %v2467 = vrcp.pop %v943
        %v2468 = vrcp.pop %v944
        %v2469 = vrcp.pop %v945
        %v2470 = vmul.f32 %v946, %v2454
        %v2471 = vmul.f32 %v947, %v2455
        %v2472 = vmul.f32 %v948, %v2456
        %v2473 = vmul.f32 %v949, %v2457
        %v2474 = vmul.f32 %v950, %v2458
        %v2475 = vmul.f32 %v951, %v2459
        %v2476 = vmul.f32 %v952, %v2460
        %v2477 = vmul.f32 %v953, %v2461
        %v2478 = vmul.f32 %v954, %v2462
        %v2479 = vmul.f32 %v955, %v2463
        %v2480 = vmul.f32 %v956, %v2464
        %v2481 = vmul.f32 %v957, %v2465
        %v2482 = vmul.f32 %v958, %v2466
        %v2483 = vmul.f32 %v959, %v2467
        %v2484 = vmul.f32 %v960, %v2468
        %v2485 = vmul.f32 %v961, %v2469
        %p2486 = scmp.lt.s32.totalorder %s31, 1
        // Predicated region
        $region84: #{tpu_custom_call.1} parent=63 // pred_check
          %p2487 = pneg %p2486
        $region85: #{tpu_custom_call.1} parent=63 // pred_check_branch
          %2489 = sbr.rel (%p2487) target = $region87
        $region86: #{tpu_custom_call.1} parent=63 // pred_region
          %v2490 = vpack.c.bf16 %v2470, %v2470
          %v2491 = vpack.c.bf16 %v2471, %v2471
          %v2492 = vpack.c.bf16 %v2472, %v2472
          %v2493 = vpack.c.bf16 %v2473, %v2473
          %v2494 = vpack.c.bf16 %v2474, %v2474
          %v2495 = vpack.c.bf16 %v2475, %v2475
          %v2496 = vpack.c.bf16 %v2476, %v2476
          %v2497 = vpack.c.bf16 %v2477, %v2477
          %v2498 = vpack.c.bf16 %v2478, %v2478
          %v2499 = vpack.c.bf16 %v2479, %v2479
          %v2500 = vpack.c.bf16 %v2480, %v2480
          %v2501 = vpack.c.bf16 %v2481, %v2481
          %v2502 = vpack.c.bf16 %v2482, %v2482
          %v2503 = vpack.c.bf16 %v2483, %v2483
          %v2504 = vpack.c.bf16 %v2484, %v2484
          %v2505 = vpack.c.bf16 %v2485, %v2485
          %s2506 = sand.u32 %s31, 1
          %v2523 = vunpack.c.l.b16 %v2490
          %v2524 = vunpack.c.l.b16 %v2491
          %v2525 = vunpack.c.l.b16 %v2492
          %v2526 = vunpack.c.l.b16 %v2493
          %v2527 = vunpack.c.l.b16 %v2494
          %v2528 = vunpack.c.l.b16 %v2495
          %v2529 = vunpack.c.l.b16 %v2496
          %v2530 = vunpack.c.l.b16 %v2497
          %v2531 = vunpack.c.l.b16 %v2498
          %v2532 = vunpack.c.l.b16 %v2499
          %v2533 = vunpack.c.l.b16 %v2500
          %v2534 = vunpack.c.l.b16 %v2501
          %v2535 = vunpack.c.l.b16 %v2502
          %v2536 = vunpack.c.l.b16 %v2503
          %v2537 = vunpack.c.l.b16 %v2504
          %v2538 = vunpack.c.l.b16 %v2505
          %vm2539 = vcmask 1041409
          %v2540 = vsel %vm2539, %v2524, %v2523
          %vm2541 = vcmask 1042434
          %v2542 = vsel %vm2541, %v2525, %v2540
          %vm2543 = vcmask 1043459
          %v2544 = vsel %vm2543, %v2526, %v2542
          %vm2545 = vcmask 1044484
          %v2546 = vsel %vm2545, %v2527, %v2544
          %vm2547 = vcmask 1045509
          %v2548 = vsel %vm2547, %v2528, %v2546
          %vm2549 = vcmask 1046534
          %v2550 = vsel %vm2549, %v2529, %v2548
          %vm2551 = vcmask 1047559
          %v2552 = vsel %vm2551, %v2530, %v2550
          %v2553 = vsel %vm2539, %v2532, %v2531
          %v2554 = vsel %vm2541, %v2533, %v2553
          %v2555 = vsel %vm2543, %v2534, %v2554
          %v2556 = vsel %vm2545, %v2535, %v2555
          %v2557 = vsel %vm2547, %v2536, %v2556
          %v2558 = vsel %vm2549, %v2537, %v2557
          %v2559 = vsel %vm2551, %v2538, %v2558
          %v2560 = vpack.c.b16 %v2552, %v2552
          %v2561 = vpack.c.b16 %v2559, %v2559
          %s2564 = sshra.s32 %s864, 3
          %s2565 = sand.u32 %s864, 7
          %s2566 = smul.u32 %s2506, 4
          %s2567 = sadd.s32 %s2564, %s2566
          %s2568 = smul.addr %s2567, 4
          %s2569 = scalar_lea.vmem [#allocation2], %s2568
          %vm2570 = vcmask 257024
          %2571 = vst.msk [vmem:[%s2569] sm:$0xf] %vm2570, %v2560
          %2572 = vst.msk [vmem:[%s2569 + $0x4] sm:$0xf] %vm2570, %v2561
        $region87: #{tpu_custom_call.1} parent=63 // pred_fallthru
          _
        %p2573 = scmp.eq.s32.totalorder %s31, 1
        // Predicated region
        $region88: #{tpu_custom_call.1} parent=63 // pred_check
          %p2574 = pneg %p2573
        $region89: #{tpu_custom_call.1} parent=63 // pred_check_branch
          %2576 = sbr.rel (%p2574) target = $region91
        $region90: #{tpu_custom_call.1} parent=63 // pred_region
          %vm2593 = vcmask 1041409
          %v2594 = vsel %vm2593, %v2471, %v2470
          %vm2595 = vcmask 1042434
          %v2596 = vsel %vm2595, %v2472, %v2594
          %vm2597 = vcmask 1043459
          %v2598 = vsel %vm2597, %v2473, %v2596
          %vm2599 = vcmask 1044484
          %v2600 = vsel %vm2599, %v2474, %v2598
          %vm2601 = vcmask 1045509
          %v2602 = vsel %vm2601, %v2475, %v2600
          %vm2603 = vcmask 1046534
          %v2604 = vsel %vm2603, %v2476, %v2602
          %vm2605 = vcmask 1047559
          %v2606 = vsel %vm2605, %v2477, %v2604
          %v2607 = vsel %vm2593, %v2479, %v2478
          %v2608 = vsel %vm2595, %v2480, %v2607
          %v2609 = vsel %vm2597, %v2481, %v2608
          %v2610 = vsel %vm2599, %v2482, %v2609
          %v2611 = vsel %vm2601, %v2483, %v2610
          %v2612 = vsel %vm2603, %v2484, %v2611
          %v2613 = vsel %vm2605, %v2485, %v2612
          %s2616 = scalar_lea.vmem %s530, %s864 [#allocation7]
          %vm2617 = vcmask 261120
          %2618 = vst.msk [vmem:[%s2616] sm:$0xff] %vm2617, %v2606
          %2619 = vst.msk [vmem:[%s2616 + $0x8] sm:$0xff] %vm2617, %v2613
        $region91: #{tpu_custom_call.1} parent=63 // pred_fallthru
          _
        %s2620 = sand.u32 %s338, 1
        %s2621 = scalar_lea.sflag [#allocation8], %s2620
        %s2622 = sand.u32 %s338, 1
        %s2623 = smul.addr %s2622, 32
        %s2624 = scalar_lea.vmem [#allocation7], %s2623
        // Predicated region
        $region92: #{tpu_custom_call.1} parent=63 // pred_check
          %p2625 = pneg %p348
        $region93: #{tpu_custom_call.1} parent=63 // pred_check_branch
          %2627 = sbr.rel (%p2625) target = $region95
        $region94: #{tpu_custom_call.1} parent=63 // pred_region
          %2629 = vsyncadd %s2621, 0
          %s2630 = smul.addr %s30, 4
          %s2631 = smul.addr %s2630, 8
          %s2632 = scalar_lea.hbm %s11, %s2631
          %s2633 = sshll.u32 %s2624, 4
          %s2634 = int_to_ptr.vmem [resolvable:$true] %s2633
          %s2635 = sshll.u32 %s2632, 4
          %s2636 = int_to_ptr.hbm [resolvable:$true] %s2635
          %2641 = dma.vmem_to_hbm [thread:$0]  %s2634, 512, %s2636, %s2621, 128, 128, 8
        $region95: #{tpu_custom_call.1} parent=63 // pred_fallthru
          _
      $region64: #{tpu_custom_call.1} parent=5 // pred_fallthru
        _
      %p2642 = scmp.le.s32.totalorder 2, %s20
      // Predicated region
      $region96: #{tpu_custom_call.1} parent=5 // pred_check
        %p2643 = pneg %p2642
      $region97: #{tpu_custom_call.1} parent=5 // pred_check_branch
        %2645 = sbr.rel (%p2643) target = $region99
      $region98: #{tpu_custom_call.1} parent=5 // pred_region
        %s2646 = ssub.s32 %s20, 2
        // Predicated region
        $region100: #{tpu_custom_call.1} parent=98 // pred_check
          %p2647 = pneg %p354
        $region101: #{tpu_custom_call.1} parent=98 // pred_check_branch
          %2649 = sbr.rel (%p2647) target = $region103
        $region102: #{tpu_custom_call.1} parent=98 // pred_region
          %s2650 = sand.u32 %s339, 1
          %s2651 = scalar_lea.sflag [#allocation8], %s2650
          %s2652 = sand.u32 %s339, 1
          %s2653 = smul.addr %s2652, 32
          %s2654 = scalar_lea.vmem [#allocation7], %s2653
          %2656 = dma.done %s2651, 512
        $region103: #{tpu_custom_call.1} parent=98 // pred_fallthru
          _
      $region99: #{tpu_custom_call.1} parent=5 // pred_fallthru
        _
    $region6: #{tpu_custom_call.1} parent=1 // loop_footer
      %s24 = sadd.s32 1, %s20
    $region7: #{tpu_custom_call.1} parent=1 // loop_footer_branch
      %19 = sbr.rel target = $region3
    $region8: #{tpu_custom_call.1} parent=1 // loop_exit
      _
    %2657 = vsyncpa [#allocation8], 1
    %s2658 = scalar_lea.sflag [#allocation8], 1
    %2659 = vsyncpa %s2658, 1

</llo_original>
